<compile_context>
chip_gen: v5e
topology: v5e:2x2
jax: 0.10.0
libtpu: 0.0.40
codegen_flags: <defaults>
</compile_context>

<pallas_src>
import jax
import jax.numpy as jnp
import numpy as np
from jax import lax
from jax.experimental import pallas as pl
from jax.experimental.pallas import tpu as pltpu


def neural_grid_kernel(x_ref, a0_ref, a1_ref, a2_ref, b_ref, out_ref, st_ref):
    """Runs the full width-W column recurrence in one invocation.

    x_ref  : (B, H)    initial column (height REVERSED, height on lanes)
    a*_ref : (W, H)    per-column tap rows (pre-shifted + reversed + transposed)
    b_ref  : (W, H)    per-column bias rows (reversed + transposed)
    out_ref: (B, H)    final column (still reversed; wrapper un-reverses)
    st_ref : (B, H+2)  VMEM running state; lanes [H, H+2) are a zero halo that
                       supplies the out-of-range stencil taps.
    """
    h = out_ref.shape[1]
    n_cols = a0_ref.shape[0]

    st_ref[...] = jnp.zeros_like(st_ref)      # zero the halo lanes once
    st_ref[:, 0:h] = x_ref[...]               # lane-aligned (offset-0) store

    def column_step(j, carry):
        st = st_ref[...]                      # (B, H+2) full load
        t0 = st[:, 0:h]                       # v[i]    (reversed coords)
        t1 = st[:, 1:h + 1]                   # v[i-1]  -> +1 lane after reversal
        t2 = st[:, 2:h + 2]                   # v[i-2]  -> +2 lanes (halo = 0)
        a0 = a0_ref[pl.ds(j, 1), :]           # (1, H) lane-aligned row reads
        a1 = a1_ref[pl.ds(j, 1), :]
        a2 = a2_ref[pl.ds(j, 1), :]
        bb = b_ref[pl.ds(j, 1), :]
        # Pure VPU (+EUP sin); boundary rows handled by zero tap rows / halo.
        z = t0 * a0 + t1 * a1 + t2 * a2 + bb
        st_ref[:, 0:h] = jnp.sin(z)           # aligned store; halo stays zero
        return carry

    lax.fori_loop(0, n_cols, column_step, 0, unroll=True)
    out_ref[...] = st_ref[:, 0:h]


def neural_grid_forward(x, w_padded, b):
    """x: (B, H) f32, w_padded: (H+2, W) f32 (the module's self.w with zero
    top/bottom rows), b: (H, W) f32.  Returns (B, H): activations of the last
    grid column (the module output for B == 1)."""
    bsz, gh = x.shape
    ghp2, gw = w_padded.shape
    assert ghp2 == gh + 2 and b.shape == (gh, gw)

    w_true = w_padded[1:gh + 1, :]                                  # (H, W)
    zrow = jnp.zeros((1, gw), w_true.dtype)
    tap0 = w_true                                                   # * v[i]
    tap1 = jnp.concatenate([zrow, w_true[:gh - 1]], axis=0)         # * v[i-1]
    tap2 = jnp.concatenate([zrow, zrow, w_true[:gh - 2]], axis=0)   # * v[i-2]

    # Reverse height so the stencil looks forward (+1/+2 lanes) and transpose
    # to (W, H) so each recurrence step reads a lane-aligned row.  These are
    # tiny one-time parameter-side ops (no per-step HBM padding of x).
    a0 = tap0[::-1, :].T
    a1 = tap1[::-1, :].T
    a2 = tap2[::-1, :].T
    br = b[::-1, :].T
    x_rev = x[:, ::-1]

    out_rev = pl.pallas_call(
        neural_grid_kernel,
        out_shape=jax.ShapeDtypeStruct((bsz, gh), x.dtype),
        in_specs=[pl.BlockSpec(memory_space=pltpu.MemorySpace.VMEM)] * 5,
        out_specs=pl.BlockSpec(memory_space=pltpu.MemorySpace.VMEM),
        scratch_shapes=[pltpu.VMEM((bsz, gh + 2), jnp.float32)],
        compiler_params=pltpu.CompilerParams(
            vmem_limit_bytes=32 * 1024 * 1024),   # explicit, safe on v5e/v6e/v7x
    )(x_rev, a0, a1, a2, br)
    return out_rev[:, ::-1]


def reference_forward_np(x, w_padded, b):
    """Literal numpy transcription of NaiveNeuralGrid.forward (float64)."""
    w_np = np.asarray(w_padded, np.float64)       # (H+2, W), zero top/bottom rows
    b_np = np.asarray(b, np.float64)              # (H, W)
    gh, gw = b_np.shape
    a = np.zeros((gh + 2, gw + 1), np.float64)
    a[1:gh + 1, 0] = np.asarray(x, np.float64).reshape(gh)
    for j in range(gw):
        for i in range(gh):
            z = (a[i - 1, j] * w_np[i - 1, j]     # i-1 == -1 wraps like the list
                 + a[i, j] * w_np[i, j]
                 + a[i + 1, j] * w_np[i + 1, j]
                 + b_np[i, j])
            a[i + 1, j + 1] = np.sin(z)
    return a[1:gh + 1, gw].reshape(1, gh)


if __name__ == "__main__":
    GH, GW = 16, 8                       # grid_2d height / width (small)
    key = jax.random.PRNGKey(0)
    kx, kw, kb = jax.random.split(key, 3)

    # xavier-style init with fan_in=3, fan_out=3 (as in the module's __init__).
    bound = (6.0 / (3 + 3)) ** 0.5
    w_true = jax.random.uniform(kw, (GH, GW), jnp.float32, -bound, bound)
    w_padded = jnp.pad(w_true, ((1, 1), (0, 0)))  # the module's self.w, (GH+2, GW)
    # Module inits b = 0; a small random b keeps the same semantics and
    # actually exercises the bias path.
    b = 0.1 * jax.random.normal(kb, (GH, GW), jnp.float32)

    x = jax.random.normal(kx, (1, GH), jnp.float32)   # batch 1, as in the module

    out = neural_grid_forward(x, w_padded, b)
    out = jax.block_until_ready(out)
    assert out.shape == (1, GH)

    ref = reference_forward_np(x, w_padded, b)
    np.testing.assert_allclose(np.asarray(out, np.float64), ref,
                               rtol=1e-4, atol=1e-4)
    print("KERNEL_OK")
</pallas_src>

<mosaic_0001>
module attributes {stable_mosaic.version = 11 : i64} {
  func.func @neural_grid_kernel(%arg0: memref<1x16xf32, #tpu.memory_space<vmem>>, %arg1: memref<8x16xf32, #tpu.memory_space<vmem>>, %arg2: memref<8x16xf32, #tpu.memory_space<vmem>>, %arg3: memref<8x16xf32, #tpu.memory_space<vmem>>, %arg4: memref<8x16xf32, #tpu.memory_space<vmem>>, %arg5: memref<1x16xf32, #tpu.memory_space<vmem>>, %arg6: memref<1x18xf32, #tpu.memory_space<vmem>>) attributes {dimension_semantics = [], scalar_prefetch = 0 : i64, scratch_operands = 1 : i64, tpu.core_type = #tpu.core_type<tc>} {
    %cst = arith.constant 0.000000e+00 : f32
    %0 = vector.broadcast %cst : f32 to vector<1x18xf32>
    %c0 = arith.constant 0 : index
    %c0_0 = arith.constant 0 : index
    %1 = vector.load %arg6[%c0, %c0_0] : memref<1x18xf32, #tpu.memory_space<vmem>>, vector<1x18xf32>
    tpu.vector_store %arg6[%c0, %c0_0], %0 {strides = array<i32>} : memref<1x18xf32, #tpu.memory_space<vmem>>, vector<1x18xf32>,
    %c0_1 = arith.constant 0 : index
    %c0_2 = arith.constant 0 : index
    %2 = vector.load %arg0[%c0_1, %c0_2] : memref<1x16xf32, #tpu.memory_space<vmem>>, vector<1x16xf32>
    %c0_3 = arith.constant 0 : index
    %c0_4 = arith.constant 0 : index
    %3 = vector.load %arg6[%c0_3, %c0_4] : memref<1x18xf32, #tpu.memory_space<vmem>>, vector<1x16xf32>
    tpu.vector_store %arg6[%c0_3, %c0_4], %2 {strides = array<i32>} : memref<1x18xf32, #tpu.memory_space<vmem>>, vector<1x16xf32>,
    %c0_i32 = arith.constant 0 : i32
    %c0_5 = arith.constant 0 : index
    %c0_6 = arith.constant 0 : index
    %4 = vector.load %arg6[%c0_5, %c0_6] : memref<1x18xf32, #tpu.memory_space<vmem>>, vector<1x18xf32>
    %5 = vector.extract_strided_slice %4 {offsets = [0, 0], sizes = [1, 16], strides = [1, 1]} : vector<1x18xf32> to vector<1x16xf32>
    %6 = vector.extract_strided_slice %4 {offsets = [0, 1], sizes = [1, 16], strides = [1, 1]} : vector<1x18xf32> to vector<1x16xf32>
    %7 = vector.extract_strided_slice %4 {offsets = [0, 2], sizes = [1, 16], strides = [1, 1]} : vector<1x18xf32> to vector<1x16xf32>
    %8 = arith.index_cast %c0_i32 : i32 to index
    %c0_7 = arith.constant 0 : index
    %9 = vector.load %arg1[%8, %c0_7] : memref<8x16xf32, #tpu.memory_space<vmem>>, vector<1x16xf32>
    %10 = arith.index_cast %c0_i32 : i32 to index
    %c0_8 = arith.constant 0 : index
    %11 = vector.load %arg2[%10, %c0_8] : memref<8x16xf32, #tpu.memory_space<vmem>>, vector<1x16xf32>
    %12 = arith.index_cast %c0_i32 : i32 to index
    %c0_9 = arith.constant 0 : index
    %13 = vector.load %arg3[%12, %c0_9] : memref<8x16xf32, #tpu.memory_space<vmem>>, vector<1x16xf32>
    %14 = arith.index_cast %c0_i32 : i32 to index
    %c0_10 = arith.constant 0 : index
    %15 = vector.load %arg4[%14, %c0_10] : memref<8x16xf32, #tpu.memory_space<vmem>>, vector<1x16xf32>
    %16 = arith.mulf %5, %9 : vector<1x16xf32>
    %17 = arith.mulf %6, %11 : vector<1x16xf32>
    %18 = arith.addf %16, %17 : vector<1x16xf32>
    %19 = arith.mulf %7, %13 : vector<1x16xf32>
    %20 = arith.addf %18, %19 : vector<1x16xf32>
    %21 = arith.addf %20, %15 : vector<1x16xf32>
    %22 = math.sin %21 : vector<1x16xf32>
    %c0_11 = arith.constant 0 : index
    %c0_12 = arith.constant 0 : index
    %23 = vector.load %arg6[%c0_11, %c0_12] : memref<1x18xf32, #tpu.memory_space<vmem>>, vector<1x16xf32>
    tpu.vector_store %arg6[%c0_11, %c0_12], %22 {strides = array<i32>} : memref<1x18xf32, #tpu.memory_space<vmem>>, vector<1x16xf32>,
    %c1_i32 = arith.constant 1 : i32
    %c0_13 = arith.constant 0 : index
    %c0_14 = arith.constant 0 : index
    %24 = vector.load %arg6[%c0_13, %c0_14] : memref<1x18xf32, #tpu.memory_space<vmem>>, vector<1x18xf32>
    %25 = vector.extract_strided_slice %24 {offsets = [0, 0], sizes = [1, 16], strides = [1, 1]} : vector<1x18xf32> to vector<1x16xf32>
    %26 = vector.extract_strided_slice %24 {offsets = [0, 1], sizes = [1, 16], strides = [1, 1]} : vector<1x18xf32> to vector<1x16xf32>
    %27 = vector.extract_strided_slice %24 {offsets = [0, 2], sizes = [1, 16], strides = [1, 1]} : vector<1x18xf32> to vector<1x16xf32>
    %28 = arith.index_cast %c1_i32 : i32 to index
    %c0_15 = arith.constant 0 : index
    %29 = vector.load %arg1[%28, %c0_15] : memref<8x16xf32, #tpu.memory_space<vmem>>, vector<1x16xf32>
    %30 = arith.index_cast %c1_i32 : i32 to index
    %c0_16 = arith.constant 0 : index
    %31 = vector.load %arg2[%30, %c0_16] : memref<8x16xf32, #tpu.memory_space<vmem>>, vector<1x16xf32>
    %32 = arith.index_cast %c1_i32 : i32 to index
    %c0_17 = arith.constant 0 : index
    %33 = vector.load %arg3[%32, %c0_17] : memref<8x16xf32, #tpu.memory_space<vmem>>, vector<1x16xf32>
    %34 = arith.index_cast %c1_i32 : i32 to index
    %c0_18 = arith.constant 0 : index
    %35 = vector.load %arg4[%34, %c0_18] : memref<8x16xf32, #tpu.memory_space<vmem>>, vector<1x16xf32>
    %36 = arith.mulf %25, %29 : vector<1x16xf32>
    %37 = arith.mulf %26, %31 : vector<1x16xf32>
    %38 = arith.addf %36, %37 : vector<1x16xf32>
    %39 = arith.mulf %27, %33 : vector<1x16xf32>
    %40 = arith.addf %38, %39 : vector<1x16xf32>
    %41 = arith.addf %40, %35 : vector<1x16xf32>
    %42 = math.sin %41 : vector<1x16xf32>
    %c0_19 = arith.constant 0 : index
    %c0_20 = arith.constant 0 : index
    %43 = vector.load %arg6[%c0_19, %c0_20] : memref<1x18xf32, #tpu.memory_space<vmem>>, vector<1x16xf32>
    tpu.vector_store %arg6[%c0_19, %c0_20], %42 {strides = array<i32>} : memref<1x18xf32, #tpu.memory_space<vmem>>, vector<1x16xf32>,
    %c2_i32 = arith.constant 2 : i32
    %c0_21 = arith.constant 0 : index
    %c0_22 = arith.constant 0 : index
    %44 = vector.load %arg6[%c0_21, %c0_22] : memref<1x18xf32, #tpu.memory_space<vmem>>, vector<1x18xf32>
    %45 = vector.extract_strided_slice %44 {offsets = [0, 0], sizes = [1, 16], strides = [1, 1]} : vector<1x18xf32> to vector<1x16xf32>
    %46 = vector.extract_strided_slice %44 {offsets = [0, 1], sizes = [1, 16], strides = [1, 1]} : vector<1x18xf32> to vector<1x16xf32>
    %47 = vector.extract_strided_slice %44 {offsets = [0, 2], sizes = [1, 16], strides = [1, 1]} : vector<1x18xf32> to vector<1x16xf32>
    %48 = arith.index_cast %c2_i32 : i32 to index
    %c0_23 = arith.constant 0 : index
    %49 = vector.load %arg1[%48, %c0_23] : memref<8x16xf32, #tpu.memory_space<vmem>>, vector<1x16xf32>
    %50 = arith.index_cast %c2_i32 : i32 to index
    %c0_24 = arith.constant 0 : index
    %51 = vector.load %arg2[%50, %c0_24] : memref<8x16xf32, #tpu.memory_space<vmem>>, vector<1x16xf32>
    %52 = arith.index_cast %c2_i32 : i32 to index
    %c0_25 = arith.constant 0 : index
    %53 = vector.load %arg3[%52, %c0_25] : memref<8x16xf32, #tpu.memory_space<vmem>>, vector<1x16xf32>
    %54 = arith.index_cast %c2_i32 : i32 to index
    %c0_26 = arith.constant 0 : index
    %55 = vector.load %arg4[%54, %c0_26] : memref<8x16xf32, #tpu.memory_space<vmem>>, vector<1x16xf32>
    %56 = arith.mulf %45, %49 : vector<1x16xf32>
    %57 = arith.mulf %46, %51 : vector<1x16xf32>
    %58 = arith.addf %56, %57 : vector<1x16xf32>
    %59 = arith.mulf %47, %53 : vector<1x16xf32>
    %60 = arith.addf %58, %59 : vector<1x16xf32>
    %61 = arith.addf %60, %55 : vector<1x16xf32>
    %62 = math.sin %61 : vector<1x16xf32>
    %c0_27 = arith.constant 0 : index
    %c0_28 = arith.constant 0 : index
    %63 = vector.load %arg6[%c0_27, %c0_28] : memref<1x18xf32, #tpu.memory_space<vmem>>, vector<1x16xf32>
    tpu.vector_store %arg6[%c0_27, %c0_28], %62 {strides = array<i32>} : memref<1x18xf32, #tpu.memory_space<vmem>>, vector<1x16xf32>,
    %c3_i32 = arith.constant 3 : i32
    %c0_29 = arith.constant 0 : index
    %c0_30 = arith.constant 0 : index
    %64 = vector.load %arg6[%c0_29, %c0_30] : memref<1x18xf32, #tpu.memory_space<vmem>>, vector<1x18xf32>
    %65 = vector.extract_strided_slice %64 {offsets = [0, 0], sizes = [1, 16], strides = [1, 1]} : vector<1x18xf32> to vector<1x16xf32>
    %66 = vector.extract_strided_slice %64 {offsets = [0, 1], sizes = [1, 16], strides = [1, 1]} : vector<1x18xf32> to vector<1x16xf32>
    %67 = vector.extract_strided_slice %64 {offsets = [0, 2], sizes = [1, 16], strides = [1, 1]} : vector<1x18xf32> to vector<1x16xf32>
    %68 = arith.index_cast %c3_i32 : i32 to index
    %c0_31 = arith.constant 0 : index
    %69 = vector.load %arg1[%68, %c0_31] : memref<8x16xf32, #tpu.memory_space<vmem>>, vector<1x16xf32>
    %70 = arith.index_cast %c3_i32 : i32 to index
    %c0_32 = arith.constant 0 : index
    %71 = vector.load %arg2[%70, %c0_32] : memref<8x16xf32, #tpu.memory_space<vmem>>, vector<1x16xf32>
    %72 = arith.index_cast %c3_i32 : i32 to index
    %c0_33 = arith.constant 0 : index
    %73 = vector.load %arg3[%72, %c0_33] : memref<8x16xf32, #tpu.memory_space<vmem>>, vector<1x16xf32>
    %74 = arith.index_cast %c3_i32 : i32 to index
    %c0_34 = arith.constant 0 : index
    %75 = vector.load %arg4[%74, %c0_34] : memref<8x16xf32, #tpu.memory_space<vmem>>, vector<1x16xf32>
    %76 = arith.mulf %65, %69 : vector<1x16xf32>
    %77 = arith.mulf %66, %71 : vector<1x16xf32>
    %78 = arith.addf %76, %77 : vector<1x16xf32>
    %79 = arith.mulf %67, %73 : vector<1x16xf32>
    %80 = arith.addf %78, %79 : vector<1x16xf32>
    %81 = arith.addf %80, %75 : vector<1x16xf32>
    %82 = math.sin %81 : vector<1x16xf32>
    %c0_35 = arith.constant 0 : index
    %c0_36 = arith.constant 0 : index
    %83 = vector.load %arg6[%c0_35, %c0_36] : memref<1x18xf32, #tpu.memory_space<vmem>>, vector<1x16xf32>
    tpu.vector_store %arg6[%c0_35, %c0_36], %82 {strides = array<i32>} : memref<1x18xf32, #tpu.memory_space<vmem>>, vector<1x16xf32>,
    %c4_i32 = arith.constant 4 : i32
    %c0_37 = arith.constant 0 : index
    %c0_38 = arith.constant 0 : index
    %84 = vector.load %arg6[%c0_37, %c0_38] : memref<1x18xf32, #tpu.memory_space<vmem>>, vector<1x18xf32>
    %85 = vector.extract_strided_slice %84 {offsets = [0, 0], sizes = [1, 16], strides = [1, 1]} : vector<1x18xf32> to vector<1x16xf32>
    %86 = vector.extract_strided_slice %84 {offsets = [0, 1], sizes = [1, 16], strides = [1, 1]} : vector<1x18xf32> to vector<1x16xf32>
    %87 = vector.extract_strided_slice %84 {offsets = [0, 2], sizes = [1, 16], strides = [1, 1]} : vector<1x18xf32> to vector<1x16xf32>
    %88 = arith.index_cast %c4_i32 : i32 to index
    %c0_39 = arith.constant 0 : index
    %89 = vector.load %arg1[%88, %c0_39] : memref<8x16xf32, #tpu.memory_space<vmem>>, vector<1x16xf32>
    %90 = arith.index_cast %c4_i32 : i32 to index
    %c0_40 = arith.constant 0 : index
    %91 = vector.load %arg2[%90, %c0_40] : memref<8x16xf32, #tpu.memory_space<vmem>>, vector<1x16xf32>
    %92 = arith.index_cast %c4_i32 : i32 to index
    %c0_41 = arith.constant 0 : index
    %93 = vector.load %arg3[%92, %c0_41] : memref<8x16xf32, #tpu.memory_space<vmem>>, vector<1x16xf32>
    %94 = arith.index_cast %c4_i32 : i32 to index
    %c0_42 = arith.constant 0 : index
    %95 = vector.load %arg4[%94, %c0_42] : memref<8x16xf32, #tpu.memory_space<vmem>>, vector<1x16xf32>
    %96 = arith.mulf %85, %89 : vector<1x16xf32>
    %97 = arith.mulf %86, %91 : vector<1x16xf32>
    %98 = arith.addf %96, %97 : vector<1x16xf32>
    %99 = arith.mulf %87, %93 : vector<1x16xf32>
    %100 = arith.addf %98, %99 : vector<1x16xf32>
    %101 = arith.addf %100, %95 : vector<1x16xf32>
    %102 = math.sin %101 : vector<1x16xf32>
    %c0_43 = arith.constant 0 : index
    %c0_44 = arith.constant 0 : index
    %103 = vector.load %arg6[%c0_43, %c0_44] : memref<1x18xf32, #tpu.memory_space<vmem>>, vector<1x16xf32>
    tpu.vector_store %arg6[%c0_43, %c0_44], %102 {strides = array<i32>} : memref<1x18xf32, #tpu.memory_space<vmem>>, vector<1x16xf32>,
    %c5_i32 = arith.constant 5 : i32
    %c0_45 = arith.constant 0 : index
    %c0_46 = arith.constant 0 : index
    %104 = vector.load %arg6[%c0_45, %c0_46] : memref<1x18xf32, #tpu.memory_space<vmem>>, vector<1x18xf32>
    %105 = vector.extract_strided_slice %104 {offsets = [0, 0], sizes = [1, 16], strides = [1, 1]} : vector<1x18xf32> to vector<1x16xf32>
    %106 = vector.extract_strided_slice %104 {offsets = [0, 1], sizes = [1, 16], strides = [1, 1]} : vector<1x18xf32> to vector<1x16xf32>
    %107 = vector.extract_strided_slice %104 {offsets = [0, 2], sizes = [1, 16], strides = [1, 1]} : vector<1x18xf32> to vector<1x16xf32>
    %108 = arith.index_cast %c5_i32 : i32 to index
    %c0_47 = arith.constant 0 : index
    %109 = vector.load %arg1[%108, %c0_47] : memref<8x16xf32, #tpu.memory_space<vmem>>, vector<1x16xf32>
    %110 = arith.index_cast %c5_i32 : i32 to index
    %c0_48 = arith.constant 0 : index
    %111 = vector.load %arg2[%110, %c0_48] : memref<8x16xf32, #tpu.memory_space<vmem>>, vector<1x16xf32>
    %112 = arith.index_cast %c5_i32 : i32 to index
    %c0_49 = arith.constant 0 : index
    %113 = vector.load %arg3[%112, %c0_49] : memref<8x16xf32, #tpu.memory_space<vmem>>, vector<1x16xf32>
    %114 = arith.index_cast %c5_i32 : i32 to index
    %c0_50 = arith.constant 0 : index
    %115 = vector.load %arg4[%114, %c0_50] : memref<8x16xf32, #tpu.memory_space<vmem>>, vector<1x16xf32>
    %116 = arith.mulf %105, %109 : vector<1x16xf32>
    %117 = arith.mulf %106, %111 : vector<1x16xf32>
    %118 = arith.addf %116, %117 : vector<1x16xf32>
    %119 = arith.mulf %107, %113 : vector<1x16xf32>
    %120 = arith.addf %118, %119 : vector<1x16xf32>
    %121 = arith.addf %120, %115 : vector<1x16xf32>
    %122 = math.sin %121 : vector<1x16xf32>
    %c0_51 = arith.constant 0 : index
    %c0_52 = arith.constant 0 : index
    %123 = vector.load %arg6[%c0_51, %c0_52] : memref<1x18xf32, #tpu.memory_space<vmem>>, vector<1x16xf32>
    tpu.vector_store %arg6[%c0_51, %c0_52], %122 {strides = array<i32>} : memref<1x18xf32, #tpu.memory_space<vmem>>, vector<1x16xf32>,
    %c6_i32 = arith.constant 6 : i32
    %c0_53 = arith.constant 0 : index
    %c0_54 = arith.constant 0 : index
    %124 = vector.load %arg6[%c0_53, %c0_54] : memref<1x18xf32, #tpu.memory_space<vmem>>, vector<1x18xf32>
    %125 = vector.extract_strided_slice %124 {offsets = [0, 0], sizes = [1, 16], strides = [1, 1]} : vector<1x18xf32> to vector<1x16xf32>
    %126 = vector.extract_strided_slice %124 {offsets = [0, 1], sizes = [1, 16], strides = [1, 1]} : vector<1x18xf32> to vector<1x16xf32>
    %127 = vector.extract_strided_slice %124 {offsets = [0, 2], sizes = [1, 16], strides = [1, 1]} : vector<1x18xf32> to vector<1x16xf32>
    %128 = arith.index_cast %c6_i32 : i32 to index
    %c0_55 = arith.constant 0 : index
    %129 = vector.load %arg1[%128, %c0_55] : memref<8x16xf32, #tpu.memory_space<vmem>>, vector<1x16xf32>
    %130 = arith.index_cast %c6_i32 : i32 to index
    %c0_56 = arith.constant 0 : index
    %131 = vector.load %arg2[%130, %c0_56] : memref<8x16xf32, #tpu.memory_space<vmem>>, vector<1x16xf32>
    %132 = arith.index_cast %c6_i32 : i32 to index
    %c0_57 = arith.constant 0 : index
    %133 = vector.load %arg3[%132, %c0_57] : memref<8x16xf32, #tpu.memory_space<vmem>>, vector<1x16xf32>
    %134 = arith.index_cast %c6_i32 : i32 to index
    %c0_58 = arith.constant 0 : index
    %135 = vector.load %arg4[%134, %c0_58] : memref<8x16xf32, #tpu.memory_space<vmem>>, vector<1x16xf32>
    %136 = arith.mulf %125, %129 : vector<1x16xf32>
    %137 = arith.mulf %126, %131 : vector<1x16xf32>
    %138 = arith.addf %136, %137 : vector<1x16xf32>
    %139 = arith.mulf %127, %133 : vector<1x16xf32>
    %140 = arith.addf %138, %139 : vector<1x16xf32>
    %141 = arith.addf %140, %135 : vector<1x16xf32>
    %142 = math.sin %141 : vector<1x16xf32>
    %c0_59 = arith.constant 0 : index
    %c0_60 = arith.constant 0 : index
    %143 = vector.load %arg6[%c0_59, %c0_60] : memref<1x18xf32, #tpu.memory_space<vmem>>, vector<1x16xf32>
    tpu.vector_store %arg6[%c0_59, %c0_60], %142 {strides = array<i32>} : memref<1x18xf32, #tpu.memory_space<vmem>>, vector<1x16xf32>,
    %c7_i32 = arith.constant 7 : i32
    %c0_61 = arith.constant 0 : index
    %c0_62 = arith.constant 0 : index
    %144 = vector.load %arg6[%c0_61, %c0_62] : memref<1x18xf32, #tpu.memory_space<vmem>>, vector<1x18xf32>
    %145 = vector.extract_strided_slice %144 {offsets = [0, 0], sizes = [1, 16], strides = [1, 1]} : vector<1x18xf32> to vector<1x16xf32>
    %146 = vector.extract_strided_slice %144 {offsets = [0, 1], sizes = [1, 16], strides = [1, 1]} : vector<1x18xf32> to vector<1x16xf32>
    %147 = vector.extract_strided_slice %144 {offsets = [0, 2], sizes = [1, 16], strides = [1, 1]} : vector<1x18xf32> to vector<1x16xf32>
    %148 = arith.index_cast %c7_i32 : i32 to index
    %c0_63 = arith.constant 0 : index
    %149 = vector.load %arg1[%148, %c0_63] : memref<8x16xf32, #tpu.memory_space<vmem>>, vector<1x16xf32>
    %150 = arith.index_cast %c7_i32 : i32 to index
    %c0_64 = arith.constant 0 : index
    %151 = vector.load %arg2[%150, %c0_64] : memref<8x16xf32, #tpu.memory_space<vmem>>, vector<1x16xf32>
    %152 = arith.index_cast %c7_i32 : i32 to index
    %c0_65 = arith.constant 0 : index
    %153 = vector.load %arg3[%152, %c0_65] : memref<8x16xf32, #tpu.memory_space<vmem>>, vector<1x16xf32>
    %154 = arith.index_cast %c7_i32 : i32 to index
    %c0_66 = arith.constant 0 : index
    %155 = vector.load %arg4[%154, %c0_66] : memref<8x16xf32, #tpu.memory_space<vmem>>, vector<1x16xf32>
    %156 = arith.mulf %145, %149 : vector<1x16xf32>
    %157 = arith.mulf %146, %151 : vector<1x16xf32>
    %158 = arith.addf %156, %157 : vector<1x16xf32>
    %159 = arith.mulf %147, %153 : vector<1x16xf32>
    %160 = arith.addf %158, %159 : vector<1x16xf32>
    %161 = arith.addf %160, %155 : vector<1x16xf32>
    %162 = math.sin %161 : vector<1x16xf32>
    %c0_67 = arith.constant 0 : index
    %c0_68 = arith.constant 0 : index
    %163 = vector.load %arg6[%c0_67, %c0_68] : memref<1x18xf32, #tpu.memory_space<vmem>>, vector<1x16xf32>
    tpu.vector_store %arg6[%c0_67, %c0_68], %162 {strides = array<i32>} : memref<1x18xf32, #tpu.memory_space<vmem>>, vector<1x16xf32>,
    %c8_i32 = arith.constant 8 : i32
    %c0_69 = arith.constant 0 : index
    %c0_70 = arith.constant 0 : index
    %164 = vector.load %arg6[%c0_69, %c0_70] : memref<1x18xf32, #tpu.memory_space<vmem>>, vector<1x16xf32>
    %c0_71 = arith.constant 0 : index
    %c0_72 = arith.constant 0 : index
    %165 = vector.load %arg5[%c0_71, %c0_72] : memref<1x16xf32, #tpu.memory_space<vmem>>, vector<1x16xf32>
    tpu.vector_store %arg5[%c0_71, %c0_72], %164 {strides = array<i32>} : memref<1x16xf32, #tpu.memory_space<vmem>>, vector<1x16xf32>,
    return
  }
}

</mosaic_0001>

<llo_original>
// kernel: tpu_custom_call.1
$region0: #{tpu_custom_call.1}
  #allocation0 [shape = 'u32[]', space=smem, size = 0x4, offset = 0x4, fixed_abs, tag = 'smem constant byte address 0x4 - core index']
  #allocation1 [shape = 'u32[72,128]{1,0:T(1,128)}', space=vmem, size = 0x9000, scoped, tag = 'internal scratch']
  #allocation2 [shape = 'f32[1,18]{1,0:T(1,128)}', space=vmem, size = 0x200, scoped, tag = 'scratch operand']
  %s0 = inlined_call_operand.hbm [shape: f32[1,16], index: 0, kind: input, shape index: {}]
  %s1 = inlined_call_operand.hbm [shape: f32[8,16], index: 1, kind: input, shape index: {}]
  %s2 = inlined_call_operand.hbm [shape: f32[8,16], index: 2, kind: input, shape index: {}]
  %s3 = inlined_call_operand.hbm [shape: f32[8,16], index: 3, kind: input, shape index: {}]
  %s4 = inlined_call_operand.hbm [shape: f32[8,16], index: 4, kind: input, shape index: {}]
  %s5 = inlined_call_operand.hbm [shape: f32[1,16], index: 5, kind: output, shape index: {}]
  %s6 = sld [smem:[#allocation0]]
  $region50: #{tpu_custom_call.1} parent=0
    _
  %s8 = ssub.s32 1, %s6
  %s9 = scalar_select 0, %s8, %s6
  $region1: #{tpu_custom_call.1} parent=0
    #allocation3 [shape = 'u8[512]{0}', space=vmem, size = 0x400, scoped, tag = 'input window, operand 0, single buffered']
    #allocation4 [shape = 's32[1]{0}', space=sflag, size = 0x4, scoped, tag = 'scoped memory for tpu_custom_call.1']
    #allocation5 [shape = 's32[1]{0}', space=sflag, size = 0x4, scoped, tag = 'scoped memory for tpu_custom_call.1']
    #allocation6 [shape = 'u8[4096]{0}', space=vmem, size = 0x1000, scoped, tag = 'input window, operand 1, single buffered']
    #allocation7 [shape = 's32[1]{0}', space=sflag, size = 0x4, scoped, tag = 'scoped memory for tpu_custom_call.1']
    #allocation8 [shape = 'u8[4096]{0}', space=vmem, size = 0x1000, scoped, tag = 'input window, operand 2, single buffered']
    #allocation9 [shape = 'u8[4096]{0}', space=vmem, size = 0x1000, scoped, tag = 'input window, operand 3, single buffered']
    #allocation10 [shape = 's32[1]{0}', space=sflag, size = 0x4, scoped, tag = 'scoped memory for tpu_custom_call.1']
    #allocation11 [shape = 'u8[4096]{0}', space=vmem, size = 0x1000, scoped, tag = 'input window, operand 4, single buffered']
    #allocation12 [shape = 'u8[512]{0}', space=vmem, size = 0x400, scoped, tag = 'output window, operand 0, single buffered']
    %10 = vsyncpa [#allocation4], 0
    %11 = vsyncpa [#allocation7], 0
    %12 = vsyncpa [#allocation10], 0
    %13 = vsyncpa [#allocation5], 0
    // Predicated region
    $region2: #{tpu_custom_call.1} parent=1 // pred_check
      _
    $region3: #{tpu_custom_call.1} parent=1 // pred_check_branch
      %15 = sbr.rel (0) target = $region5
    $region4: #{tpu_custom_call.1} parent=1 // pred_region
      %17 = vsyncadd [#allocation4], 0
      %s19 = sshll.u32 %s0, 4
      %s20 = int_to_ptr.hbm [resolvable:$true] %s19
      %s21 = sshll.u32 [#allocation3], 4
      %s22 = int_to_ptr.vmem [resolvable:$true] %s21
      %24 = dma.hbm_to_vmem [thread:$0]  %s20, 16, %s22, [#allocation4]
    $region5: #{tpu_custom_call.1} parent=1 // pred_fallthru
      _
    // Predicated region
    $region6: #{tpu_custom_call.1} parent=1 // pred_check
      _
    $region7: #{tpu_custom_call.1} parent=1 // pred_check_branch
      %26 = sbr.rel (0) target = $region9
    $region8: #{tpu_custom_call.1} parent=1 // pred_region
      %28 = vsyncadd [#allocation7], 0
      %s30 = sshll.u32 %s1, 4
      %s31 = int_to_ptr.hbm [resolvable:$true] %s30
      %s32 = sshll.u32 [#allocation6], 4
      %s33 = int_to_ptr.vmem [resolvable:$true] %s32
      %35 = dma.hbm_to_vmem [thread:$0]  %s31, 128, %s33, [#allocation7]
    $region9: #{tpu_custom_call.1} parent=1 // pred_fallthru
      _
    // Predicated region
    $region10: #{tpu_custom_call.1} parent=1 // pred_check
      _
    $region11: #{tpu_custom_call.1} parent=1 // pred_check_branch
      %37 = sbr.rel (0) target = $region13
    $region12: #{tpu_custom_call.1} parent=1 // pred_region
      %39 = vsyncadd [#allocation7], 0
      %s41 = sshll.u32 %s2, 4
      %s42 = int_to_ptr.hbm [resolvable:$true] %s41
      %s43 = sshll.u32 [#allocation8], 4
      %s44 = int_to_ptr.vmem [resolvable:$true] %s43
      %46 = dma.hbm_to_vmem [thread:$0]  %s42, 128, %s44, [#allocation7]
    $region13: #{tpu_custom_call.1} parent=1 // pred_fallthru
      _
    // Predicated region
    $region14: #{tpu_custom_call.1} parent=1 // pred_check
      _
    $region15: #{tpu_custom_call.1} parent=1 // pred_check_branch
      %48 = sbr.rel (0) target = $region17
    $region16: #{tpu_custom_call.1} parent=1 // pred_region
      %50 = vsyncadd [#allocation10], 0
      %s52 = sshll.u32 %s3, 4
      %s53 = int_to_ptr.hbm [resolvable:$true] %s52
      %s54 = sshll.u32 [#allocation9], 4
      %s55 = int_to_ptr.vmem [resolvable:$true] %s54
      %57 = dma.hbm_to_vmem [thread:$0]  %s53, 128, %s55, [#allocation10]
    $region17: #{tpu_custom_call.1} parent=1 // pred_fallthru
      _
    // Predicated region
    $region18: #{tpu_custom_call.1} parent=1 // pred_check
      _
    $region19: #{tpu_custom_call.1} parent=1 // pred_check_branch
      %59 = sbr.rel (0) target = $region21
    $region20: #{tpu_custom_call.1} parent=1 // pred_region
      %61 = vsyncadd [#allocation10], 0
      %s63 = sshll.u32 %s4, 4
      %s64 = int_to_ptr.hbm [resolvable:$true] %s63
      %s65 = sshll.u32 [#allocation11], 4
      %s66 = int_to_ptr.vmem [resolvable:$true] %s65
      %68 = dma.hbm_to_vmem [thread:$0]  %s64, 128, %s66, [#allocation10]
    $region21: #{tpu_custom_call.1} parent=1 // pred_fallthru
      _
    // Predicated region
    $region22: #{tpu_custom_call.1} parent=1 // pred_check
      _
    $region23: #{tpu_custom_call.1} parent=1 // pred_check_branch
      %70 = sbr.rel (0) target = $region25
    $region24: #{tpu_custom_call.1} parent=1 // pred_region
      %72 = dma.done [#allocation4], 16
    $region25: #{tpu_custom_call.1} parent=1 // pred_fallthru
      _
    // Predicated region
    $region26: #{tpu_custom_call.1} parent=1 // pred_check
      _
    $region27: #{tpu_custom_call.1} parent=1 // pred_check_branch
      %74 = sbr.rel (0) target = $region29
    $region28: #{tpu_custom_call.1} parent=1 // pred_region
      %76 = dma.done [#allocation7], 128
    $region29: #{tpu_custom_call.1} parent=1 // pred_fallthru
      _
    // Predicated region
    $region30: #{tpu_custom_call.1} parent=1 // pred_check
      _
    $region31: #{tpu_custom_call.1} parent=1 // pred_check_branch
      %78 = sbr.rel (0) target = $region33
    $region32: #{tpu_custom_call.1} parent=1 // pred_region
      %80 = dma.done [#allocation7], 128
    $region33: #{tpu_custom_call.1} parent=1 // pred_fallthru
      _
    // Predicated region
    $region34: #{tpu_custom_call.1} parent=1 // pred_check
      _
    $region35: #{tpu_custom_call.1} parent=1 // pred_check_branch
      %82 = sbr.rel (0) target = $region37
    $region36: #{tpu_custom_call.1} parent=1 // pred_region
      %84 = dma.done [#allocation10], 128
    $region37: #{tpu_custom_call.1} parent=1 // pred_fallthru
      _
    // Predicated region
    $region38: #{tpu_custom_call.1} parent=1 // pred_check
      _
    $region39: #{tpu_custom_call.1} parent=1 // pred_check_branch
      %86 = sbr.rel (0) target = $region41
    $region40: #{tpu_custom_call.1} parent=1 // pred_region
      %88 = dma.done [#allocation10], 128
    $region41: #{tpu_custom_call.1} parent=1 // pred_fallthru
      _
    %vm89 = vcmask 139264
    %90 = vst.msk [vmem:[#allocation2] sm:$0x1] %vm89, 0.0
    %v91 = vld [vmem:[#allocation3] sm:$0x1]
    %vm92 = vcmask 122880
    %93 = vst.msk [vmem:[#allocation2] sm:$0x1] %vm92, %v91
    %v94 = vld [vmem:[#allocation2] sm:$0x1]
    %v95 = vld [vmem:[#allocation6] sm:$0x1]
    %v96 = vld [vmem:[#allocation8] sm:$0x1]
    %v97 = vld [vmem:[#allocation9] sm:$0x1]
    %v98 = vld [vmem:[#allocation11] sm:$0x1]
    %v99 = vmul.f32 %v94, %v95
    %101 = vrot.lane.b32.xlu0 %v96, 1
    %v102 = vpop.permute.xlu0 %101
    %v104 = vmul.f32 %v94, %v102
    %106 = vrot.lane.b32.xlu0 %v104, 127
    %v107 = vpop.permute.xlu0 %106
    %v109 = vadd.f32 %v99, %v107
    %111 = vrot.lane.b32.xlu0 %v97, 2
    %v112 = vpop.permute.xlu0 %111
    %v114 = vmul.f32 %v94, %v112
    %116 = vrot.lane.b32.xlu0 %v114, 126
    %v117 = vpop.permute.xlu0 %116
    %v119 = vadd.f32 %v109, %v117
    %v120 = vadd.f32 %v119, %v98
    %v121 = vand.u32 2147483647, %v120
    %vm122 = vcmp.le.f32.partialorder %v121, 0.7853982
    %vm123 = vcmp.lt.s32.totalorder %v120, 0
    %v124 = vand.u32 %v120, 2139095040
    %v125 = vshrl.u32 %v124, 23
    %v126 = vsub.s32 %v125, 127
    %v127 = vand.u32 2147483647, %v120
    %v128 = vand.u32 %v127, 8388607
    %v129 = vor.u32 %v128, 8388608
    %v130 = vsub.s32 0, %v129
    %v131 = vadd.s32 %v126, 1
    %vm132 = vcmp.gt.s32.totalorder %v131, 0
    %v133 = vsel %vm132, %v131, 0
    %v134 = vshrl.u32 %v133, 5
    %v135 = vand.u32 %v133, 31
    %v136 = vsub.s32 32, %v135
    %v137 = vshrl.u32 683565275, %v136
    %v138 = vshll.u32 683565275, %v135
    %v139 = vshrl.u32 2475754826, %v136
    %v140 = vor.u32 %v138, %v139
    %v141 = vshll.u32 2475754826, %v135
    %v142 = vshrl.u32 2131351028, %v136
    %v143 = vor.u32 %v141, %v142
    %v144 = vshll.u32 2131351028, %v135
    %v145 = vshrl.u32 2102212464, %v136
    %v146 = vor.u32 %v144, %v145
    %v147 = vshll.u32 2102212464, %v135
    %v148 = vshrl.u32 920167782, %v136
    %v149 = vor.u32 %v147, %v148
    %v150 = vshll.u32 920167782, %v135
    %v151 = vshrl.u32 1326507024, %v136
    %v152 = vor.u32 %v150, %v151
    %vm153 = vcmp.lt.s32.totalorder %v134, 1
    %vm154 = vcmp.lt.s32.totalorder %v134, 2
    %vm155 = vcmp.lt.s32.totalorder %v134, 3
    %vm156 = vcmp.lt.s32.totalorder %v134, 4
    %v157 = vsel %vm153, %v137, %v140
    %v158 = vsel %vm156, %v146, 2102212464
    %v159 = vsel %vm155, %v143, %v158
    %v160 = vsel %vm154, %v157, %v159
    %v161 = vsel %vm153, %v140, %v143
    %v162 = vsel %vm156, %v149, 920167782
    %v163 = vsel %vm155, %v146, %v162
    %v164 = vsel %vm154, %v161, %v163
    %v165 = vsel %vm153, %v143, %v146
    %v166 = vsel %vm156, %v152, 1326507024
    %v167 = vsel %vm155, %v149, %v166
    %v168 = vsel %vm154, %v165, %v167
    %v169 = vshll.u32 %v129, 8
    %v170 = vand.u32 %v169, 65535
    %v171 = vshrl.u32 %v169, 16
    %v172 = vand.u32 %v168, 65535
    %v173 = vshrl.u32 %v168, 16
    %v174 = vmul.u32 %v170, %v172
    %v175 = vmul.u32 %v170, %v173
    %v176 = vmul.u32 %v171, %v172
    %v177 = vmul.u32 %v171, %v173
    %v178 = vshll.u32 %v175, 16
    %v179 = vshrl.u32 %v175, 16
    %v180 = vshll.u32 %v176, 16
    %v181 = vshrl.u32 %v176, 16
    %vm182 = vc.u32 %v174, %v178
    %v183 = vsel %vm182, 1, 0
    %v184 = vadd.s32 %v174, %v178
    %v185 = vadd.s32 %v177, %v183
    %vm186 = vc.u32 %v184, %v180
    %v187 = vsel %vm186, 1, 0
    %v188 = vadd.s32 %v184, %v180
    %v189 = vadd.s32 %v185, %v187
    %v190 = vadd.s32 %v189, %v179
    %v191 = vadd.s32 %v190, %v181
    %v192 = vand.u32 %v169, 65535
    %v193 = vshrl.u32 %v169, 16
    %v194 = vand.u32 %v164, 65535
    %v195 = vshrl.u32 %v164, 16
    %v196 = vmul.u32 %v192, %v194
    %v197 = vmul.u32 %v192, %v195
    %v198 = vmul.u32 %v193, %v194
    %v199 = vmul.u32 %v193, %v195
    %v200 = vshll.u32 %v197, 16
    %v201 = vshrl.u32 %v197, 16
    %v202 = vshll.u32 %v198, 16
    %v203 = vshrl.u32 %v198, 16
    %vm204 = vc.u32 %v196, %v200
    %v205 = vsel %vm204, 1, 0
    %v206 = vadd.s32 %v196, %v200
    %v207 = vadd.s32 %v199, %v205
    %vm208 = vc.u32 %v206, %v202
    %v209 = vsel %vm208, 1, 0
    %v210 = vadd.s32 %v206, %v202
    %v211 = vadd.s32 %v207, %v209
    %v212 = vadd.s32 %v211, %v201
    %v213 = vadd.s32 %v212, %v203
    %v214 = vmul.u32 %v169, %v160
    %v215 = vadd.s32 %v191, %v210
    %vm216 = vc.u32 %v191, %v210
    %v217 = vadd.s32 %v213, 1
    %v218 = vsel %vm216, %v217, %v213
    %v219 = vadd.s32 %v214, %v218
    %v220 = vadd.s32 %v219, 536870912
    %v221 = vshrl.u32 %v220, 30
    %v222 = vshll.u32 %v221, 30
    %v223 = vsub.s32 %v219, %v222
    %vm224 = vcmp.lt.s32.totalorder %v223, 0
    %v225 = vsub.s32 0, %v223
    %v226 = vsel %vm224, %v225, %v223
    %v227 = vclz %v226
    %v228 = vsub.s32 %v227, 2
    %vm229 = vcmp.gt.s32.totalorder 0, %v228
    %v230 = vsel %vm229, 0, %v228
    %v231 = vsub.s32 32, %v230
    %v232 = vshll.u32 %v223, %v230
    %v233 = vshrl.u32 %v215, %v231
    %v234 = vor.u32 %v232, %v233
    %v235 = vsub.s32 4294967266, %v230
    %v236 = vadd.s32 %v235, 127
    %v237 = vshll.u32 %v236, 23
    %v238 = vor.u32 4788187, %v237
    %v239 = vand.u32 2147483647, %v238
    %v241 = vcvt.s32.f32 %v234
    %v242 = vmul.f32 %v241, %v239
    %v243 = vxor.u32 %v242, 2147483648
    %v244 = vsel %vm123, %v243, %v242
    %v245 = vsub.s32 4, %v221
    %v246 = vsel %vm123, %v245, %v221
    %v247 = vsel %vm122, %v120, %v244
    %v248 = vsel %vm122, 0, %v246
    %v249 = vmul.f32 %v247, %v247
    %v250 = vmul.f32 %v249, -0.001358992
    %v251 = vadd.f32 %v250, 0.041655596
    %v252 = vmul.f32 %v249, %v251
    %v253 = vadd.f32 %v252, -0.4999988
    %v254 = vmul.f32 %v249, %v253
    %v255 = vadd.f32 1.0, %v254
    %v256 = vmul.f32 %v247, %v247
    %v257 = vmul.f32 %v256, -0.00019511016
    %v258 = vadd.f32 %v257, 0.008332121
    %v259 = vmul.f32 %v256, %v258
    %v260 = vadd.f32 %v259, -0.16666654
    %v261 = vmul.f32 %v256, %v260
    %v262 = vadd.f32 %v261, 1.0
    %v263 = vmul.f32 %v262, %v247
    %vm264 = vweird.f32 %v120
    %v265 = vadd.s32 %v248, 3
    %v266 = vand.u32 %v265, 3
    %vm267 = vcmp.lt.s32.totalorder %v266, 2
    %vm268 = vcmp.eq.s32.totalorder %v266, 0
    %v269 = vxor.u32 %v263, 2147483648
    %v270 = vsel %vm268, %v255, %v269
    %vm271 = vcmp.eq.s32.totalorder %v266, 2
    %v272 = vxor.u32 %v255, 2147483648
    %v273 = vsel %vm271, %v272, %v263
    %v274 = vsel %vm267, %v270, %v273
    %v275 = vsel %vm264, nan, %v274
    %276 = vst.msk [vmem:[#allocation2] sm:$0x1] %vm92, %v275
    %v277 = vld [vmem:[#allocation2] sm:$0x1]
    %v278 = vld [vmem:[#allocation6 + $0x1] sm:$0x1]
    %v279 = vld [vmem:[#allocation8 + $0x1] sm:$0x1]
    %v280 = vld [vmem:[#allocation9 + $0x1] sm:$0x1]
    %v281 = vld [vmem:[#allocation11 + $0x1] sm:$0x1]
    %v282 = vmul.f32 %v277, %v278
    %284 = vrot.lane.b32.xlu0 %v279, 1
    %v285 = vpop.permute.xlu0 %284
    %v287 = vmul.f32 %v277, %v285
    %289 = vrot.lane.b32.xlu0 %v287, 127
    %v290 = vpop.permute.xlu0 %289
    %v292 = vadd.f32 %v282, %v290
    %294 = vrot.lane.b32.xlu0 %v280, 2
    %v295 = vpop.permute.xlu0 %294
    %v297 = vmul.f32 %v277, %v295
    %299 = vrot.lane.b32.xlu0 %v297, 126
    %v300 = vpop.permute.xlu0 %299
    %v302 = vadd.f32 %v292, %v300
    %v303 = vadd.f32 %v302, %v281
    %v304 = vand.u32 2147483647, %v303
    %vm305 = vcmp.le.f32.partialorder %v304, 0.7853982
    %vm306 = vcmp.lt.s32.totalorder %v303, 0
    %v307 = vand.u32 %v303, 2139095040
    %v308 = vshrl.u32 %v307, 23
    %v309 = vsub.s32 %v308, 127
    %v310 = vand.u32 2147483647, %v303
    %v311 = vand.u32 %v310, 8388607
    %v312 = vor.u32 %v311, 8388608
    %v313 = vsub.s32 0, %v312
    %v314 = vadd.s32 %v309, 1
    %vm315 = vcmp.gt.s32.totalorder %v314, 0
    %v316 = vsel %vm315, %v314, 0
    %v317 = vshrl.u32 %v316, 5
    %v318 = vand.u32 %v316, 31
    %v319 = vsub.s32 32, %v318
    %v320 = vshrl.u32 683565275, %v319
    %v321 = vshll.u32 683565275, %v318
    %v322 = vshrl.u32 2475754826, %v319
    %v323 = vor.u32 %v321, %v322
    %v324 = vshll.u32 2475754826, %v318
    %v325 = vshrl.u32 2131351028, %v319
    %v326 = vor.u32 %v324, %v325
    %v327 = vshll.u32 2131351028, %v318
    %v328 = vshrl.u32 2102212464, %v319
    %v329 = vor.u32 %v327, %v328
    %v330 = vshll.u32 2102212464, %v318
    %v331 = vshrl.u32 920167782, %v319
    %v332 = vor.u32 %v330, %v331
    %v333 = vshll.u32 920167782, %v318
    %v334 = vshrl.u32 1326507024, %v319
    %v335 = vor.u32 %v333, %v334
    %vm336 = vcmp.lt.s32.totalorder %v317, 1
    %vm337 = vcmp.lt.s32.totalorder %v317, 2
    %vm338 = vcmp.lt.s32.totalorder %v317, 3
    %vm339 = vcmp.lt.s32.totalorder %v317, 4
    %v340 = vsel %vm336, %v320, %v323
    %v341 = vsel %vm339, %v329, 2102212464
    %v342 = vsel %vm338, %v326, %v341
    %v343 = vsel %vm337, %v340, %v342
    %v344 = vsel %vm336, %v323, %v326
    %v345 = vsel %vm339, %v332, 920167782
    %v346 = vsel %vm338, %v329, %v345
    %v347 = vsel %vm337, %v344, %v346
    %v348 = vsel %vm336, %v326, %v329
    %v349 = vsel %vm339, %v335, 1326507024
    %v350 = vsel %vm338, %v332, %v349
    %v351 = vsel %vm337, %v348, %v350
    %v352 = vshll.u32 %v312, 8
    %v353 = vand.u32 %v352, 65535
    %v354 = vshrl.u32 %v352, 16
    %v355 = vand.u32 %v351, 65535
    %v356 = vshrl.u32 %v351, 16
    %v357 = vmul.u32 %v353, %v355
    %v358 = vmul.u32 %v353, %v356
    %v359 = vmul.u32 %v354, %v355
    %v360 = vmul.u32 %v354, %v356
    %v361 = vshll.u32 %v358, 16
    %v362 = vshrl.u32 %v358, 16
    %v363 = vshll.u32 %v359, 16
    %v364 = vshrl.u32 %v359, 16
    %vm365 = vc.u32 %v357, %v361
    %v366 = vsel %vm365, 1, 0
    %v367 = vadd.s32 %v357, %v361
    %v368 = vadd.s32 %v360, %v366
    %vm369 = vc.u32 %v367, %v363
    %v370 = vsel %vm369, 1, 0
    %v371 = vadd.s32 %v367, %v363
    %v372 = vadd.s32 %v368, %v370
    %v373 = vadd.s32 %v372, %v362
    %v374 = vadd.s32 %v373, %v364
    %v375 = vand.u32 %v352, 65535
    %v376 = vshrl.u32 %v352, 16
    %v377 = vand.u32 %v347, 65535
    %v378 = vshrl.u32 %v347, 16
    %v379 = vmul.u32 %v375, %v377
    %v380 = vmul.u32 %v375, %v378
    %v381 = vmul.u32 %v376, %v377
    %v382 = vmul.u32 %v376, %v378
    %v383 = vshll.u32 %v380, 16
    %v384 = vshrl.u32 %v380, 16
    %v385 = vshll.u32 %v381, 16
    %v386 = vshrl.u32 %v381, 16
    %vm387 = vc.u32 %v379, %v383
    %v388 = vsel %vm387, 1, 0
    %v389 = vadd.s32 %v379, %v383
    %v390 = vadd.s32 %v382, %v388
    %vm391 = vc.u32 %v389, %v385
    %v392 = vsel %vm391, 1, 0
    %v393 = vadd.s32 %v389, %v385
    %v394 = vadd.s32 %v390, %v392
    %v395 = vadd.s32 %v394, %v384
    %v396 = vadd.s32 %v395, %v386
    %v397 = vmul.u32 %v352, %v343
    %v398 = vadd.s32 %v374, %v393
    %vm399 = vc.u32 %v374, %v393
    %v400 = vadd.s32 %v396, 1
    %v401 = vsel %vm399, %v400, %v396
    %v402 = vadd.s32 %v397, %v401
    %v403 = vadd.s32 %v402, 536870912
    %v404 = vshrl.u32 %v403, 30
    %v405 = vshll.u32 %v404, 30
    %v406 = vsub.s32 %v402, %v405
    %vm407 = vcmp.lt.s32.totalorder %v406, 0
    %v408 = vsub.s32 0, %v406
    %v409 = vsel %vm407, %v408, %v406
    %v410 = vclz %v409
    %v411 = vsub.s32 %v410, 2
    %vm412 = vcmp.gt.s32.totalorder 0, %v411
    %v413 = vsel %vm412, 0, %v411
    %v414 = vsub.s32 32, %v413
    %v415 = vshll.u32 %v406, %v413
    %v416 = vshrl.u32 %v398, %v414
    %v417 = vor.u32 %v415, %v416
    %v418 = vsub.s32 4294967266, %v413
    %v419 = vadd.s32 %v418, 127
    %v420 = vshll.u32 %v419, 23
    %v421 = vor.u32 4788187, %v420
    %v422 = vand.u32 2147483647, %v421
    %v424 = vcvt.s32.f32 %v417
    %v425 = vmul.f32 %v424, %v422
    %v426 = vxor.u32 %v425, 2147483648
    %v427 = vsel %vm306, %v426, %v425
    %v428 = vsub.s32 4, %v404
    %v429 = vsel %vm306, %v428, %v404
    %v430 = vsel %vm305, %v303, %v427
    %v431 = vsel %vm305, 0, %v429
    %v432 = vmul.f32 %v430, %v430
    %v433 = vmul.f32 %v432, -0.001358992
    %v434 = vadd.f32 %v433, 0.041655596
    %v435 = vmul.f32 %v432, %v434
    %v436 = vadd.f32 %v435, -0.4999988
    %v437 = vmul.f32 %v432, %v436
    %v438 = vadd.f32 1.0, %v437
    %v439 = vmul.f32 %v430, %v430
    %v440 = vmul.f32 %v439, -0.00019511016
    %v441 = vadd.f32 %v440, 0.008332121
    %v442 = vmul.f32 %v439, %v441
    %v443 = vadd.f32 %v442, -0.16666654
    %v444 = vmul.f32 %v439, %v443
    %v445 = vadd.f32 %v444, 1.0
    %v446 = vmul.f32 %v445, %v430
    %vm447 = vweird.f32 %v303
    %v448 = vadd.s32 %v431, 3
    %v449 = vand.u32 %v448, 3
    %vm450 = vcmp.lt.s32.totalorder %v449, 2
    %vm451 = vcmp.eq.s32.totalorder %v449, 0
    %v452 = vxor.u32 %v446, 2147483648
    %v453 = vsel %vm451, %v438, %v452
    %vm454 = vcmp.eq.s32.totalorder %v449, 2
    %v455 = vxor.u32 %v438, 2147483648
    %v456 = vsel %vm454, %v455, %v446
    %v457 = vsel %vm450, %v453, %v456
    %v458 = vsel %vm447, nan, %v457
    %459 = vst.msk [vmem:[#allocation2] sm:$0x1] %vm92, %v458
    %v460 = vld [vmem:[#allocation2] sm:$0x1]
    %v461 = vld [vmem:[#allocation6 + $0x2] sm:$0x1]
    %v462 = vld [vmem:[#allocation8 + $0x2] sm:$0x1]
    %v463 = vld [vmem:[#allocation9 + $0x2] sm:$0x1]
    %v464 = vld [vmem:[#allocation11 + $0x2] sm:$0x1]
    %v465 = vmul.f32 %v460, %v461
    %467 = vrot.lane.b32.xlu0 %v462, 1
    %v468 = vpop.permute.xlu0 %467
    %v470 = vmul.f32 %v460, %v468
    %472 = vrot.lane.b32.xlu0 %v470, 127
    %v473 = vpop.permute.xlu0 %472
    %v475 = vadd.f32 %v465, %v473
    %477 = vrot.lane.b32.xlu0 %v463, 2
    %v478 = vpop.permute.xlu0 %477
    %v480 = vmul.f32 %v460, %v478
    %482 = vrot.lane.b32.xlu0 %v480, 126
    %v483 = vpop.permute.xlu0 %482
    %v485 = vadd.f32 %v475, %v483
    %v486 = vadd.f32 %v485, %v464
    %v487 = vand.u32 2147483647, %v486
    %vm488 = vcmp.le.f32.partialorder %v487, 0.7853982
    %vm489 = vcmp.lt.s32.totalorder %v486, 0
    %v490 = vand.u32 %v486, 2139095040
    %v491 = vshrl.u32 %v490, 23
    %v492 = vsub.s32 %v491, 127
    %v493 = vand.u32 2147483647, %v486
    %v494 = vand.u32 %v493, 8388607
    %v495 = vor.u32 %v494, 8388608
    %v496 = vsub.s32 0, %v495
    %v497 = vadd.s32 %v492, 1
    %vm498 = vcmp.gt.s32.totalorder %v497, 0
    %v499 = vsel %vm498, %v497, 0
    %v500 = vshrl.u32 %v499, 5
    %v501 = vand.u32 %v499, 31
    %v502 = vsub.s32 32, %v501
    %v503 = vshrl.u32 683565275, %v502
    %v504 = vshll.u32 683565275, %v501
    %v505 = vshrl.u32 2475754826, %v502
    %v506 = vor.u32 %v504, %v505
    %v507 = vshll.u32 2475754826, %v501
    %v508 = vshrl.u32 2131351028, %v502
    %v509 = vor.u32 %v507, %v508
    %v510 = vshll.u32 2131351028, %v501
    %v511 = vshrl.u32 2102212464, %v502
    %v512 = vor.u32 %v510, %v511
    %v513 = vshll.u32 2102212464, %v501
    %v514 = vshrl.u32 920167782, %v502
    %v515 = vor.u32 %v513, %v514
    %v516 = vshll.u32 920167782, %v501
    %v517 = vshrl.u32 1326507024, %v502
    %v518 = vor.u32 %v516, %v517
    %vm519 = vcmp.lt.s32.totalorder %v500, 1
    %vm520 = vcmp.lt.s32.totalorder %v500, 2
    %vm521 = vcmp.lt.s32.totalorder %v500, 3
    %vm522 = vcmp.lt.s32.totalorder %v500, 4
    %v523 = vsel %vm519, %v503, %v506
    %v524 = vsel %vm522, %v512, 2102212464
    %v525 = vsel %vm521, %v509, %v524
    %v526 = vsel %vm520, %v523, %v525
    %v527 = vsel %vm519, %v506, %v509
    %v528 = vsel %vm522, %v515, 920167782
    %v529 = vsel %vm521, %v512, %v528
    %v530 = vsel %vm520, %v527, %v529
    %v531 = vsel %vm519, %v509, %v512
    %v532 = vsel %vm522, %v518, 1326507024
    %v533 = vsel %vm521, %v515, %v532
    %v534 = vsel %vm520, %v531, %v533
    %v535 = vshll.u32 %v495, 8
    %v536 = vand.u32 %v535, 65535
    %v537 = vshrl.u32 %v535, 16
    %v538 = vand.u32 %v534, 65535
    %v539 = vshrl.u32 %v534, 16
    %v540 = vmul.u32 %v536, %v538
    %v541 = vmul.u32 %v536, %v539
    %v542 = vmul.u32 %v537, %v538
    %v543 = vmul.u32 %v537, %v539
    %v544 = vshll.u32 %v541, 16
    %v545 = vshrl.u32 %v541, 16
    %v546 = vshll.u32 %v542, 16
    %v547 = vshrl.u32 %v542, 16
    %vm548 = vc.u32 %v540, %v544
    %v549 = vsel %vm548, 1, 0
    %v550 = vadd.s32 %v540, %v544
    %v551 = vadd.s32 %v543, %v549
    %vm552 = vc.u32 %v550, %v546
    %v553 = vsel %vm552, 1, 0
    %v554 = vadd.s32 %v550, %v546
    %v555 = vadd.s32 %v551, %v553
    %v556 = vadd.s32 %v555, %v545
    %v557 = vadd.s32 %v556, %v547
    %v558 = vand.u32 %v535, 65535
    %v559 = vshrl.u32 %v535, 16
    %v560 = vand.u32 %v530, 65535
    %v561 = vshrl.u32 %v530, 16
    %v562 = vmul.u32 %v558, %v560
    %v563 = vmul.u32 %v558, %v561
    %v564 = vmul.u32 %v559, %v560
    %v565 = vmul.u32 %v559, %v561
    %v566 = vshll.u32 %v563, 16
    %v567 = vshrl.u32 %v563, 16
    %v568 = vshll.u32 %v564, 16
    %v569 = vshrl.u32 %v564, 16
    %vm570 = vc.u32 %v562, %v566
    %v571 = vsel %vm570, 1, 0
    %v572 = vadd.s32 %v562, %v566
    %v573 = vadd.s32 %v565, %v571
    %vm574 = vc.u32 %v572, %v568
    %v575 = vsel %vm574, 1, 0
    %v576 = vadd.s32 %v572, %v568
    %v577 = vadd.s32 %v573, %v575
    %v578 = vadd.s32 %v577, %v567
    %v579 = vadd.s32 %v578, %v569
    %v580 = vmul.u32 %v535, %v526
    %v581 = vadd.s32 %v557, %v576
    %vm582 = vc.u32 %v557, %v576
    %v583 = vadd.s32 %v579, 1
    %v584 = vsel %vm582, %v583, %v579
    %v585 = vadd.s32 %v580, %v584
    %v586 = vadd.s32 %v585, 536870912
    %v587 = vshrl.u32 %v586, 30
    %v588 = vshll.u32 %v587, 30
    %v589 = vsub.s32 %v585, %v588
    %vm590 = vcmp.lt.s32.totalorder %v589, 0
    %v591 = vsub.s32 0, %v589
    %v592 = vsel %vm590, %v591, %v589
    %v593 = vclz %v592
    %v594 = vsub.s32 %v593, 2
    %vm595 = vcmp.gt.s32.totalorder 0, %v594
    %v596 = vsel %vm595, 0, %v594
    %v597 = vsub.s32 32, %v596
    %v598 = vshll.u32 %v589, %v596
    %v599 = vshrl.u32 %v581, %v597
    %v600 = vor.u32 %v598, %v599
    %v601 = vsub.s32 4294967266, %v596
    %v602 = vadd.s32 %v601, 127
    %v603 = vshll.u32 %v602, 23
    %v604 = vor.u32 4788187, %v603
    %v605 = vand.u32 2147483647, %v604
    %v607 = vcvt.s32.f32 %v600
    %v608 = vmul.f32 %v607, %v605
    %v609 = vxor.u32 %v608, 2147483648
    %v610 = vsel %vm489, %v609, %v608
    %v611 = vsub.s32 4, %v587
    %v612 = vsel %vm489, %v611, %v587
    %v613 = vsel %vm488, %v486, %v610
    %v614 = vsel %vm488, 0, %v612
    %v615 = vmul.f32 %v613, %v613
    %v616 = vmul.f32 %v615, -0.001358992
    %v617 = vadd.f32 %v616, 0.041655596
    %v618 = vmul.f32 %v615, %v617
    %v619 = vadd.f32 %v618, -0.4999988
    %v620 = vmul.f32 %v615, %v619
    %v621 = vadd.f32 1.0, %v620
    %v622 = vmul.f32 %v613, %v613
    %v623 = vmul.f32 %v622, -0.00019511016
    %v624 = vadd.f32 %v623, 0.008332121
    %v625 = vmul.f32 %v622, %v624
    %v626 = vadd.f32 %v625, -0.16666654
    %v627 = vmul.f32 %v622, %v626
    %v628 = vadd.f32 %v627, 1.0
    %v629 = vmul.f32 %v628, %v613
    %vm630 = vweird.f32 %v486
    %v631 = vadd.s32 %v614, 3
    %v632 = vand.u32 %v631, 3
    %vm633 = vcmp.lt.s32.totalorder %v632, 2
    %vm634 = vcmp.eq.s32.totalorder %v632, 0
    %v635 = vxor.u32 %v629, 2147483648
    %v636 = vsel %vm634, %v621, %v635
    %vm637 = vcmp.eq.s32.totalorder %v632, 2
    %v638 = vxor.u32 %v621, 2147483648
    %v639 = vsel %vm637, %v638, %v629
    %v640 = vsel %vm633, %v636, %v639
    %v641 = vsel %vm630, nan, %v640
    %642 = vst.msk [vmem:[#allocation2] sm:$0x1] %vm92, %v641
    %v643 = vld [vmem:[#allocation2] sm:$0x1]
    %v644 = vld [vmem:[#allocation6 + $0x3] sm:$0x1]
    %v645 = vld [vmem:[#allocation8 + $0x3] sm:$0x1]
    %v646 = vld [vmem:[#allocation9 + $0x3] sm:$0x1]
    %v647 = vld [vmem:[#allocation11 + $0x3] sm:$0x1]
    %v648 = vmul.f32 %v643, %v644
    %650 = vrot.lane.b32.xlu0 %v645, 1
    %v651 = vpop.permute.xlu0 %650
    %v653 = vmul.f32 %v643, %v651
    %655 = vrot.lane.b32.xlu0 %v653, 127
    %v656 = vpop.permute.xlu0 %655
    %v658 = vadd.f32 %v648, %v656
    %660 = vrot.lane.b32.xlu0 %v646, 2
    %v661 = vpop.permute.xlu0 %660
    %v663 = vmul.f32 %v643, %v661
    %665 = vrot.lane.b32.xlu0 %v663, 126
    %v666 = vpop.permute.xlu0 %665
    %v668 = vadd.f32 %v658, %v666
    %v669 = vadd.f32 %v668, %v647
    %v670 = vand.u32 2147483647, %v669
    %vm671 = vcmp.le.f32.partialorder %v670, 0.7853982
    %vm672 = vcmp.lt.s32.totalorder %v669, 0
    %v673 = vand.u32 %v669, 2139095040
    %v674 = vshrl.u32 %v673, 23
    %v675 = vsub.s32 %v674, 127
    %v676 = vand.u32 2147483647, %v669
    %v677 = vand.u32 %v676, 8388607
    %v678 = vor.u32 %v677, 8388608
    %v679 = vsub.s32 0, %v678
    %v680 = vadd.s32 %v675, 1
    %vm681 = vcmp.gt.s32.totalorder %v680, 0
    %v682 = vsel %vm681, %v680, 0
    %v683 = vshrl.u32 %v682, 5
    %v684 = vand.u32 %v682, 31
    %v685 = vsub.s32 32, %v684
    %v686 = vshrl.u32 683565275, %v685
    %v687 = vshll.u32 683565275, %v684
    %v688 = vshrl.u32 2475754826, %v685
    %v689 = vor.u32 %v687, %v688
    %v690 = vshll.u32 2475754826, %v684
    %v691 = vshrl.u32 2131351028, %v685
    %v692 = vor.u32 %v690, %v691
    %v693 = vshll.u32 2131351028, %v684
    %v694 = vshrl.u32 2102212464, %v685
    %v695 = vor.u32 %v693, %v694
    %v696 = vshll.u32 2102212464, %v684
    %v697 = vshrl.u32 920167782, %v685
    %v698 = vor.u32 %v696, %v697
    %v699 = vshll.u32 920167782, %v684
    %v700 = vshrl.u32 1326507024, %v685
    %v701 = vor.u32 %v699, %v700
    %vm702 = vcmp.lt.s32.totalorder %v683, 1
    %vm703 = vcmp.lt.s32.totalorder %v683, 2
    %vm704 = vcmp.lt.s32.totalorder %v683, 3
    %vm705 = vcmp.lt.s32.totalorder %v683, 4
    %v706 = vsel %vm702, %v686, %v689
    %v707 = vsel %vm705, %v695, 2102212464
    %v708 = vsel %vm704, %v692, %v707
    %v709 = vsel %vm703, %v706, %v708
    %v710 = vsel %vm702, %v689, %v692
    %v711 = vsel %vm705, %v698, 920167782
    %v712 = vsel %vm704, %v695, %v711
    %v713 = vsel %vm703, %v710, %v712
    %v714 = vsel %vm702, %v692, %v695
    %v715 = vsel %vm705, %v701, 1326507024
    %v716 = vsel %vm704, %v698, %v715
    %v717 = vsel %vm703, %v714, %v716
    %v718 = vshll.u32 %v678, 8
    %v719 = vand.u32 %v718, 65535
    %v720 = vshrl.u32 %v718, 16
    %v721 = vand.u32 %v717, 65535
    %v722 = vshrl.u32 %v717, 16
    %v723 = vmul.u32 %v719, %v721
    %v724 = vmul.u32 %v719, %v722
    %v725 = vmul.u32 %v720, %v721
    %v726 = vmul.u32 %v720, %v722
    %v727 = vshll.u32 %v724, 16
    %v728 = vshrl.u32 %v724, 16
    %v729 = vshll.u32 %v725, 16
    %v730 = vshrl.u32 %v725, 16
    %vm731 = vc.u32 %v723, %v727
    %v732 = vsel %vm731, 1, 0
    %v733 = vadd.s32 %v723, %v727
    %v734 = vadd.s32 %v726, %v732
    %vm735 = vc.u32 %v733, %v729
    %v736 = vsel %vm735, 1, 0
    %v737 = vadd.s32 %v733, %v729
    %v738 = vadd.s32 %v734, %v736
    %v739 = vadd.s32 %v738, %v728
    %v740 = vadd.s32 %v739, %v730
    %v741 = vand.u32 %v718, 65535
    %v742 = vshrl.u32 %v718, 16
    %v743 = vand.u32 %v713, 65535
    %v744 = vshrl.u32 %v713, 16
    %v745 = vmul.u32 %v741, %v743
    %v746 = vmul.u32 %v741, %v744
    %v747 = vmul.u32 %v742, %v743
    %v748 = vmul.u32 %v742, %v744
    %v749 = vshll.u32 %v746, 16
    %v750 = vshrl.u32 %v746, 16
    %v751 = vshll.u32 %v747, 16
    %v752 = vshrl.u32 %v747, 16
    %vm753 = vc.u32 %v745, %v749
    %v754 = vsel %vm753, 1, 0
    %v755 = vadd.s32 %v745, %v749
    %v756 = vadd.s32 %v748, %v754
    %vm757 = vc.u32 %v755, %v751
    %v758 = vsel %vm757, 1, 0
    %v759 = vadd.s32 %v755, %v751
    %v760 = vadd.s32 %v756, %v758
    %v761 = vadd.s32 %v760, %v750
    %v762 = vadd.s32 %v761, %v752
    %v763 = vmul.u32 %v718, %v709
    %v764 = vadd.s32 %v740, %v759
    %vm765 = vc.u32 %v740, %v759
    %v766 = vadd.s32 %v762, 1
    %v767 = vsel %vm765, %v766, %v762
    %v768 = vadd.s32 %v763, %v767
    %v769 = vadd.s32 %v768, 536870912
    %v770 = vshrl.u32 %v769, 30
    %v771 = vshll.u32 %v770, 30
    %v772 = vsub.s32 %v768, %v771
    %vm773 = vcmp.lt.s32.totalorder %v772, 0
    %v774 = vsub.s32 0, %v772
    %v775 = vsel %vm773, %v774, %v772
    %v776 = vclz %v775
    %v777 = vsub.s32 %v776, 2
    %vm778 = vcmp.gt.s32.totalorder 0, %v777
    %v779 = vsel %vm778, 0, %v777
    %v780 = vsub.s32 32, %v779
    %v781 = vshll.u32 %v772, %v779
    %v782 = vshrl.u32 %v764, %v780
    %v783 = vor.u32 %v781, %v782
    %v784 = vsub.s32 4294967266, %v779
    %v785 = vadd.s32 %v784, 127
    %v786 = vshll.u32 %v785, 23
    %v787 = vor.u32 4788187, %v786
    %v788 = vand.u32 2147483647, %v787
    %v790 = vcvt.s32.f32 %v783
    %v791 = vmul.f32 %v790, %v788
    %v792 = vxor.u32 %v791, 2147483648
    %v793 = vsel %vm672, %v792, %v791
    %v794 = vsub.s32 4, %v770
    %v795 = vsel %vm672, %v794, %v770
    %v796 = vsel %vm671, %v669, %v793
    %v797 = vsel %vm671, 0, %v795
    %v798 = vmul.f32 %v796, %v796
    %v799 = vmul.f32 %v798, -0.001358992
    %v800 = vadd.f32 %v799, 0.041655596
    %v801 = vmul.f32 %v798, %v800
    %v802 = vadd.f32 %v801, -0.4999988
    %v803 = vmul.f32 %v798, %v802
    %v804 = vadd.f32 1.0, %v803
    %v805 = vmul.f32 %v796, %v796
    %v806 = vmul.f32 %v805, -0.00019511016
    %v807 = vadd.f32 %v806, 0.008332121
    %v808 = vmul.f32 %v805, %v807
    %v809 = vadd.f32 %v808, -0.16666654
    %v810 = vmul.f32 %v805, %v809
    %v811 = vadd.f32 %v810, 1.0
    %v812 = vmul.f32 %v811, %v796
    %vm813 = vweird.f32 %v669
    %v814 = vadd.s32 %v797, 3
    %v815 = vand.u32 %v814, 3
    %vm816 = vcmp.lt.s32.totalorder %v815, 2
    %vm817 = vcmp.eq.s32.totalorder %v815, 0
    %v818 = vxor.u32 %v812, 2147483648
    %v819 = vsel %vm817, %v804, %v818
    %vm820 = vcmp.eq.s32.totalorder %v815, 2
    %v821 = vxor.u32 %v804, 2147483648
    %v822 = vsel %vm820, %v821, %v812
    %v823 = vsel %vm816, %v819, %v822
    %v824 = vsel %vm813, nan, %v823
    %825 = vst.msk [vmem:[#allocation2] sm:$0x1] %vm92, %v824
    %v826 = vld [vmem:[#allocation2] sm:$0x1]
    %v827 = vld [vmem:[#allocation6 + $0x4] sm:$0x1]
    %v828 = vld [vmem:[#allocation8 + $0x4] sm:$0x1]
    %v829 = vld [vmem:[#allocation9 + $0x4] sm:$0x1]
    %v830 = vld [vmem:[#allocation11 + $0x4] sm:$0x1]
    %v831 = vmul.f32 %v826, %v827
    %833 = vrot.lane.b32.xlu0 %v828, 1
    %v834 = vpop.permute.xlu0 %833
    %v836 = vmul.f32 %v826, %v834
    %838 = vrot.lane.b32.xlu0 %v836, 127
    %v839 = vpop.permute.xlu0 %838
    %v841 = vadd.f32 %v831, %v839
    %843 = vrot.lane.b32.xlu0 %v829, 2
    %v844 = vpop.permute.xlu0 %843
    %v846 = vmul.f32 %v826, %v844
    %848 = vrot.lane.b32.xlu0 %v846, 126
    %v849 = vpop.permute.xlu0 %848
    %v851 = vadd.f32 %v841, %v849
    %v852 = vadd.f32 %v851, %v830
    %v853 = vand.u32 2147483647, %v852
    %vm854 = vcmp.le.f32.partialorder %v853, 0.7853982
    %vm855 = vcmp.lt.s32.totalorder %v852, 0
    %v856 = vand.u32 %v852, 2139095040
    %v857 = vshrl.u32 %v856, 23
    %v858 = vsub.s32 %v857, 127
    %v859 = vand.u32 2147483647, %v852
    %v860 = vand.u32 %v859, 8388607
    %v861 = vor.u32 %v860, 8388608
    %v862 = vsub.s32 0, %v861
    %v863 = vadd.s32 %v858, 1
    %vm864 = vcmp.gt.s32.totalorder %v863, 0
    %v865 = vsel %vm864, %v863, 0
    %v866 = vshrl.u32 %v865, 5
    %v867 = vand.u32 %v865, 31
    %v868 = vsub.s32 32, %v867
    %v869 = vshrl.u32 683565275, %v868
    %v870 = vshll.u32 683565275, %v867
    %v871 = vshrl.u32 2475754826, %v868
    %v872 = vor.u32 %v870, %v871
    %v873 = vshll.u32 2475754826, %v867
    %v874 = vshrl.u32 2131351028, %v868
    %v875 = vor.u32 %v873, %v874
    %v876 = vshll.u32 2131351028, %v867
    %v877 = vshrl.u32 2102212464, %v868
    %v878 = vor.u32 %v876, %v877
    %v879 = vshll.u32 2102212464, %v867
    %v880 = vshrl.u32 920167782, %v868
    %v881 = vor.u32 %v879, %v880
    %v882 = vshll.u32 920167782, %v867
    %v883 = vshrl.u32 1326507024, %v868
    %v884 = vor.u32 %v882, %v883
    %vm885 = vcmp.lt.s32.totalorder %v866, 1
    %vm886 = vcmp.lt.s32.totalorder %v866, 2
    %vm887 = vcmp.lt.s32.totalorder %v866, 3
    %vm888 = vcmp.lt.s32.totalorder %v866, 4
    %v889 = vsel %vm885, %v869, %v872
    %v890 = vsel %vm888, %v878, 2102212464
    %v891 = vsel %vm887, %v875, %v890
    %v892 = vsel %vm886, %v889, %v891
    %v893 = vsel %vm885, %v872, %v875
    %v894 = vsel %vm888, %v881, 920167782
    %v895 = vsel %vm887, %v878, %v894
    %v896 = vsel %vm886, %v893, %v895
    %v897 = vsel %vm885, %v875, %v878
    %v898 = vsel %vm888, %v884, 1326507024
    %v899 = vsel %vm887, %v881, %v898
    %v900 = vsel %vm886, %v897, %v899
    %v901 = vshll.u32 %v861, 8
    %v902 = vand.u32 %v901, 65535
    %v903 = vshrl.u32 %v901, 16
    %v904 = vand.u32 %v900, 65535
    %v905 = vshrl.u32 %v900, 16
    %v906 = vmul.u32 %v902, %v904
    %v907 = vmul.u32 %v902, %v905
    %v908 = vmul.u32 %v903, %v904
    %v909 = vmul.u32 %v903, %v905
    %v910 = vshll.u32 %v907, 16
    %v911 = vshrl.u32 %v907, 16
    %v912 = vshll.u32 %v908, 16
    %v913 = vshrl.u32 %v908, 16
    %vm914 = vc.u32 %v906, %v910
    %v915 = vsel %vm914, 1, 0
    %v916 = vadd.s32 %v906, %v910
    %v917 = vadd.s32 %v909, %v915
    %vm918 = vc.u32 %v916, %v912
    %v919 = vsel %vm918, 1, 0
    %v920 = vadd.s32 %v916, %v912
    %v921 = vadd.s32 %v917, %v919
    %v922 = vadd.s32 %v921, %v911
    %v923 = vadd.s32 %v922, %v913
    %v924 = vand.u32 %v901, 65535
    %v925 = vshrl.u32 %v901, 16
    %v926 = vand.u32 %v896, 65535
    %v927 = vshrl.u32 %v896, 16
    %v928 = vmul.u32 %v924, %v926
    %v929 = vmul.u32 %v924, %v927
    %v930 = vmul.u32 %v925, %v926
    %v931 = vmul.u32 %v925, %v927
    %v932 = vshll.u32 %v929, 16
    %v933 = vshrl.u32 %v929, 16
    %v934 = vshll.u32 %v930, 16
    %v935 = vshrl.u32 %v930, 16
    %vm936 = vc.u32 %v928, %v932
    %v937 = vsel %vm936, 1, 0
    %v938 = vadd.s32 %v928, %v932
    %v939 = vadd.s32 %v931, %v937
    %vm940 = vc.u32 %v938, %v934
    %v941 = vsel %vm940, 1, 0
    %v942 = vadd.s32 %v938, %v934
    %v943 = vadd.s32 %v939, %v941
    %v944 = vadd.s32 %v943, %v933
    %v945 = vadd.s32 %v944, %v935
    %v946 = vmul.u32 %v901, %v892
    %v947 = vadd.s32 %v923, %v942
    %vm948 = vc.u32 %v923, %v942
    %v949 = vadd.s32 %v945, 1
    %v950 = vsel %vm948, %v949, %v945
    %v951 = vadd.s32 %v946, %v950
    %v952 = vadd.s32 %v951, 536870912
    %v953 = vshrl.u32 %v952, 30
    %v954 = vshll.u32 %v953, 30
    %v955 = vsub.s32 %v951, %v954
    %vm956 = vcmp.lt.s32.totalorder %v955, 0
    %v957 = vsub.s32 0, %v955
    %v958 = vsel %vm956, %v957, %v955
    %v959 = vclz %v958
    %v960 = vsub.s32 %v959, 2
    %vm961 = vcmp.gt.s32.totalorder 0, %v960
    %v962 = vsel %vm961, 0, %v960
    %v963 = vsub.s32 32, %v962
    %v964 = vshll.u32 %v955, %v962
    %v965 = vshrl.u32 %v947, %v963
    %v966 = vor.u32 %v964, %v965
    %v967 = vsub.s32 4294967266, %v962
    %v968 = vadd.s32 %v967, 127
    %v969 = vshll.u32 %v968, 23
    %v970 = vor.u32 4788187, %v969
    %v971 = vand.u32 2147483647, %v970
    %v973 = vcvt.s32.f32 %v966
    %v974 = vmul.f32 %v973, %v971
    %v975 = vxor.u32 %v974, 2147483648
    %v976 = vsel %vm855, %v975, %v974
    %v977 = vsub.s32 4, %v953
    %v978 = vsel %vm855, %v977, %v953
    %v979 = vsel %vm854, %v852, %v976
    %v980 = vsel %vm854, 0, %v978
    %v981 = vmul.f32 %v979, %v979
    %v982 = vmul.f32 %v981, -0.001358992
    %v983 = vadd.f32 %v982, 0.041655596
    %v984 = vmul.f32 %v981, %v983
    %v985 = vadd.f32 %v984, -0.4999988
    %v986 = vmul.f32 %v981, %v985
    %v987 = vadd.f32 1.0, %v986
    %v988 = vmul.f32 %v979, %v979
    %v989 = vmul.f32 %v988, -0.00019511016
    %v990 = vadd.f32 %v989, 0.008332121
    %v991 = vmul.f32 %v988, %v990
    %v992 = vadd.f32 %v991, -0.16666654
    %v993 = vmul.f32 %v988, %v992
    %v994 = vadd.f32 %v993, 1.0
    %v995 = vmul.f32 %v994, %v979
    %vm996 = vweird.f32 %v852
    %v997 = vadd.s32 %v980, 3
    %v998 = vand.u32 %v997, 3
    %vm999 = vcmp.lt.s32.totalorder %v998, 2
    %vm1000 = vcmp.eq.s32.totalorder %v998, 0
    %v1001 = vxor.u32 %v995, 2147483648
    %v1002 = vsel %vm1000, %v987, %v1001
    %vm1003 = vcmp.eq.s32.totalorder %v998, 2
    %v1004 = vxor.u32 %v987, 2147483648
    %v1005 = vsel %vm1003, %v1004, %v995
    %v1006 = vsel %vm999, %v1002, %v1005
    %v1007 = vsel %vm996, nan, %v1006
    %1008 = vst.msk [vmem:[#allocation2] sm:$0x1] %vm92, %v1007
    %v1009 = vld [vmem:[#allocation2] sm:$0x1]
    %v1010 = vld [vmem:[#allocation6 + $0x5] sm:$0x1]
    %v1011 = vld [vmem:[#allocation8 + $0x5] sm:$0x1]
    %v1012 = vld [vmem:[#allocation9 + $0x5] sm:$0x1]
    %v1013 = vld [vmem:[#allocation11 + $0x5] sm:$0x1]
    %v1014 = vmul.f32 %v1009, %v1010
    %1016 = vrot.lane.b32.xlu0 %v1011, 1
    %v1017 = vpop.permute.xlu0 %1016
    %v1019 = vmul.f32 %v1009, %v1017
    %1021 = vrot.lane.b32.xlu0 %v1019, 127
    %v1022 = vpop.permute.xlu0 %1021
    %v1024 = vadd.f32 %v1014, %v1022
    %1026 = vrot.lane.b32.xlu0 %v1012, 2
    %v1027 = vpop.permute.xlu0 %1026
    %v1029 = vmul.f32 %v1009, %v1027
    %1031 = vrot.lane.b32.xlu0 %v1029, 126
    %v1032 = vpop.permute.xlu0 %1031
    %v1034 = vadd.f32 %v1024, %v1032
    %v1035 = vadd.f32 %v1034, %v1013
    %v1036 = vand.u32 2147483647, %v1035
    %vm1037 = vcmp.le.f32.partialorder %v1036, 0.7853982
    %vm1038 = vcmp.lt.s32.totalorder %v1035, 0
    %v1039 = vand.u32 %v1035, 2139095040
    %v1040 = vshrl.u32 %v1039, 23
    %v1041 = vsub.s32 %v1040, 127
    %v1042 = vand.u32 2147483647, %v1035
    %v1043 = vand.u32 %v1042, 8388607
    %v1044 = vor.u32 %v1043, 8388608
    %v1045 = vsub.s32 0, %v1044
    %v1046 = vadd.s32 %v1041, 1
    %vm1047 = vcmp.gt.s32.totalorder %v1046, 0
    %v1048 = vsel %vm1047, %v1046, 0
    %v1049 = vshrl.u32 %v1048, 5
    %v1050 = vand.u32 %v1048, 31
    %v1051 = vsub.s32 32, %v1050
    %v1052 = vshrl.u32 683565275, %v1051
    %v1053 = vshll.u32 683565275, %v1050
    %v1054 = vshrl.u32 2475754826, %v1051
    %v1055 = vor.u32 %v1053, %v1054
    %v1056 = vshll.u32 2475754826, %v1050
    %v1057 = vshrl.u32 2131351028, %v1051
    %v1058 = vor.u32 %v1056, %v1057
    %v1059 = vshll.u32 2131351028, %v1050
    %v1060 = vshrl.u32 2102212464, %v1051
    %v1061 = vor.u32 %v1059, %v1060
    %v1062 = vshll.u32 2102212464, %v1050
    %v1063 = vshrl.u32 920167782, %v1051
    %v1064 = vor.u32 %v1062, %v1063
    %v1065 = vshll.u32 920167782, %v1050
    %v1066 = vshrl.u32 1326507024, %v1051
    %v1067 = vor.u32 %v1065, %v1066
    %vm1068 = vcmp.lt.s32.totalorder %v1049, 1
    %vm1069 = vcmp.lt.s32.totalorder %v1049, 2
    %vm1070 = vcmp.lt.s32.totalorder %v1049, 3
    %vm1071 = vcmp.lt.s32.totalorder %v1049, 4
    %v1072 = vsel %vm1068, %v1052, %v1055
    %v1073 = vsel %vm1071, %v1061, 2102212464
    %v1074 = vsel %vm1070, %v1058, %v1073
    %v1075 = vsel %vm1069, %v1072, %v1074
    %v1076 = vsel %vm1068, %v1055, %v1058
    %v1077 = vsel %vm1071, %v1064, 920167782
    %v1078 = vsel %vm1070, %v1061, %v1077
    %v1079 = vsel %vm1069, %v1076, %v1078
    %v1080 = vsel %vm1068, %v1058, %v1061
    %v1081 = vsel %vm1071, %v1067, 1326507024
    %v1082 = vsel %vm1070, %v1064, %v1081
    %v1083 = vsel %vm1069, %v1080, %v1082
    %v1084 = vshll.u32 %v1044, 8
    %v1085 = vand.u32 %v1084, 65535
    %v1086 = vshrl.u32 %v1084, 16
    %v1087 = vand.u32 %v1083, 65535
    %v1088 = vshrl.u32 %v1083, 16
    %v1089 = vmul.u32 %v1085, %v1087
    %v1090 = vmul.u32 %v1085, %v1088
    %v1091 = vmul.u32 %v1086, %v1087
    %v1092 = vmul.u32 %v1086, %v1088
    %v1093 = vshll.u32 %v1090, 16
    %v1094 = vshrl.u32 %v1090, 16
    %v1095 = vshll.u32 %v1091, 16
    %v1096 = vshrl.u32 %v1091, 16
    %vm1097 = vc.u32 %v1089, %v1093
    %v1098 = vsel %vm1097, 1, 0
    %v1099 = vadd.s32 %v1089, %v1093
    %v1100 = vadd.s32 %v1092, %v1098
    %vm1101 = vc.u32 %v1099, %v1095
    %v1102 = vsel %vm1101, 1, 0
    %v1103 = vadd.s32 %v1099, %v1095
    %v1104 = vadd.s32 %v1100, %v1102
    %v1105 = vadd.s32 %v1104, %v1094
    %v1106 = vadd.s32 %v1105, %v1096
    %v1107 = vand.u32 %v1084, 65535
    %v1108 = vshrl.u32 %v1084, 16
    %v1109 = vand.u32 %v1079, 65535
    %v1110 = vshrl.u32 %v1079, 16
    %v1111 = vmul.u32 %v1107, %v1109
    %v1112 = vmul.u32 %v1107, %v1110
    %v1113 = vmul.u32 %v1108, %v1109
    %v1114 = vmul.u32 %v1108, %v1110
    %v1115 = vshll.u32 %v1112, 16
    %v1116 = vshrl.u32 %v1112, 16
    %v1117 = vshll.u32 %v1113, 16
    %v1118 = vshrl.u32 %v1113, 16
    %vm1119 = vc.u32 %v1111, %v1115
    %v1120 = vsel %vm1119, 1, 0
    %v1121 = vadd.s32 %v1111, %v1115
    %v1122 = vadd.s32 %v1114, %v1120
    %vm1123 = vc.u32 %v1121, %v1117
    %v1124 = vsel %vm1123, 1, 0
    %v1125 = vadd.s32 %v1121, %v1117
    %v1126 = vadd.s32 %v1122, %v1124
    %v1127 = vadd.s32 %v1126, %v1116
    %v1128 = vadd.s32 %v1127, %v1118
    %v1129 = vmul.u32 %v1084, %v1075
    %v1130 = vadd.s32 %v1106, %v1125
    %vm1131 = vc.u32 %v1106, %v1125
    %v1132 = vadd.s32 %v1128, 1
    %v1133 = vsel %vm1131, %v1132, %v1128
    %v1134 = vadd.s32 %v1129, %v1133
    %v1135 = vadd.s32 %v1134, 536870912
    %v1136 = vshrl.u32 %v1135, 30
    %v1137 = vshll.u32 %v1136, 30
    %v1138 = vsub.s32 %v1134, %v1137
    %vm1139 = vcmp.lt.s32.totalorder %v1138, 0
    %v1140 = vsub.s32 0, %v1138
    %v1141 = vsel %vm1139, %v1140, %v1138
    %v1142 = vclz %v1141
    %v1143 = vsub.s32 %v1142, 2
    %vm1144 = vcmp.gt.s32.totalorder 0, %v1143
    %v1145 = vsel %vm1144, 0, %v1143
    %v1146 = vsub.s32 32, %v1145
    %v1147 = vshll.u32 %v1138, %v1145
    %v1148 = vshrl.u32 %v1130, %v1146
    %v1149 = vor.u32 %v1147, %v1148
    %v1150 = vsub.s32 4294967266, %v1145
    %v1151 = vadd.s32 %v1150, 127
    %v1152 = vshll.u32 %v1151, 23
    %v1153 = vor.u32 4788187, %v1152
    %v1154 = vand.u32 2147483647, %v1153
    %v1156 = vcvt.s32.f32 %v1149
    %v1157 = vmul.f32 %v1156, %v1154
    %v1158 = vxor.u32 %v1157, 2147483648
    %v1159 = vsel %vm1038, %v1158, %v1157
    %v1160 = vsub.s32 4, %v1136
    %v1161 = vsel %vm1038, %v1160, %v1136
    %v1162 = vsel %vm1037, %v1035, %v1159
    %v1163 = vsel %vm1037, 0, %v1161
    %v1164 = vmul.f32 %v1162, %v1162
    %v1165 = vmul.f32 %v1164, -0.001358992
    %v1166 = vadd.f32 %v1165, 0.041655596
    %v1167 = vmul.f32 %v1164, %v1166
    %v1168 = vadd.f32 %v1167, -0.4999988
    %v1169 = vmul.f32 %v1164, %v1168
    %v1170 = vadd.f32 1.0, %v1169
    %v1171 = vmul.f32 %v1162, %v1162
    %v1172 = vmul.f32 %v1171, -0.00019511016
    %v1173 = vadd.f32 %v1172, 0.008332121
    %v1174 = vmul.f32 %v1171, %v1173
    %v1175 = vadd.f32 %v1174, -0.16666654
    %v1176 = vmul.f32 %v1171, %v1175
    %v1177 = vadd.f32 %v1176, 1.0
    %v1178 = vmul.f32 %v1177, %v1162
    %vm1179 = vweird.f32 %v1035
    %v1180 = vadd.s32 %v1163, 3
    %v1181 = vand.u32 %v1180, 3
    %vm1182 = vcmp.lt.s32.totalorder %v1181, 2
    %vm1183 = vcmp.eq.s32.totalorder %v1181, 0
    %v1184 = vxor.u32 %v1178, 2147483648
    %v1185 = vsel %vm1183, %v1170, %v1184
    %vm1186 = vcmp.eq.s32.totalorder %v1181, 2
    %v1187 = vxor.u32 %v1170, 2147483648
    %v1188 = vsel %vm1186, %v1187, %v1178
    %v1189 = vsel %vm1182, %v1185, %v1188
    %v1190 = vsel %vm1179, nan, %v1189
    %1191 = vst.msk [vmem:[#allocation2] sm:$0x1] %vm92, %v1190
    %v1192 = vld [vmem:[#allocation2] sm:$0x1]
    %v1193 = vld [vmem:[#allocation6 + $0x6] sm:$0x1]
    %v1194 = vld [vmem:[#allocation8 + $0x6] sm:$0x1]
    %v1195 = vld [vmem:[#allocation9 + $0x6] sm:$0x1]
    %v1196 = vld [vmem:[#allocation11 + $0x6] sm:$0x1]
    %v1197 = vmul.f32 %v1192, %v1193
    %1199 = vrot.lane.b32.xlu0 %v1194, 1
    %v1200 = vpop.permute.xlu0 %1199
    %v1202 = vmul.f32 %v1192, %v1200
    %1204 = vrot.lane.b32.xlu0 %v1202, 127
    %v1205 = vpop.permute.xlu0 %1204
    %v1207 = vadd.f32 %v1197, %v1205
    %1209 = vrot.lane.b32.xlu0 %v1195, 2
    %v1210 = vpop.permute.xlu0 %1209
    %v1212 = vmul.f32 %v1192, %v1210
    %1214 = vrot.lane.b32.xlu0 %v1212, 126
    %v1215 = vpop.permute.xlu0 %1214
    %v1217 = vadd.f32 %v1207, %v1215
    %v1218 = vadd.f32 %v1217, %v1196
    %v1219 = vand.u32 2147483647, %v1218
    %vm1220 = vcmp.le.f32.partialorder %v1219, 0.7853982
    %vm1221 = vcmp.lt.s32.totalorder %v1218, 0
    %v1222 = vand.u32 %v1218, 2139095040
    %v1223 = vshrl.u32 %v1222, 23
    %v1224 = vsub.s32 %v1223, 127
    %v1225 = vand.u32 2147483647, %v1218
    %v1226 = vand.u32 %v1225, 8388607
    %v1227 = vor.u32 %v1226, 8388608
    %v1228 = vsub.s32 0, %v1227
    %v1229 = vadd.s32 %v1224, 1
    %vm1230 = vcmp.gt.s32.totalorder %v1229, 0
    %v1231 = vsel %vm1230, %v1229, 0
    %v1232 = vshrl.u32 %v1231, 5
    %v1233 = vand.u32 %v1231, 31
    %v1234 = vsub.s32 32, %v1233
    %v1235 = vshrl.u32 683565275, %v1234
    %v1236 = vshll.u32 683565275, %v1233
    %v1237 = vshrl.u32 2475754826, %v1234
    %v1238 = vor.u32 %v1236, %v1237
    %v1239 = vshll.u32 2475754826, %v1233
    %v1240 = vshrl.u32 2131351028, %v1234
    %v1241 = vor.u32 %v1239, %v1240
    %v1242 = vshll.u32 2131351028, %v1233
    %v1243 = vshrl.u32 2102212464, %v1234
    %v1244 = vor.u32 %v1242, %v1243
    %v1245 = vshll.u32 2102212464, %v1233
    %v1246 = vshrl.u32 920167782, %v1234
    %v1247 = vor.u32 %v1245, %v1246
    %v1248 = vshll.u32 920167782, %v1233
    %v1249 = vshrl.u32 1326507024, %v1234
    %v1250 = vor.u32 %v1248, %v1249
    %vm1251 = vcmp.lt.s32.totalorder %v1232, 1
    %vm1252 = vcmp.lt.s32.totalorder %v1232, 2
    %vm1253 = vcmp.lt.s32.totalorder %v1232, 3
    %vm1254 = vcmp.lt.s32.totalorder %v1232, 4
    %v1255 = vsel %vm1251, %v1235, %v1238
    %v1256 = vsel %vm1254, %v1244, 2102212464
    %v1257 = vsel %vm1253, %v1241, %v1256
    %v1258 = vsel %vm1252, %v1255, %v1257
    %v1259 = vsel %vm1251, %v1238, %v1241
    %v1260 = vsel %vm1254, %v1247, 920167782
    %v1261 = vsel %vm1253, %v1244, %v1260
    %v1262 = vsel %vm1252, %v1259, %v1261
    %v1263 = vsel %vm1251, %v1241, %v1244
    %v1264 = vsel %vm1254, %v1250, 1326507024
    %v1265 = vsel %vm1253, %v1247, %v1264
    %v1266 = vsel %vm1252, %v1263, %v1265
    %v1267 = vshll.u32 %v1227, 8
    %v1268 = vand.u32 %v1267, 65535
    %v1269 = vshrl.u32 %v1267, 16
    %v1270 = vand.u32 %v1266, 65535
    %v1271 = vshrl.u32 %v1266, 16
    %v1272 = vmul.u32 %v1268, %v1270
    %v1273 = vmul.u32 %v1268, %v1271
    %v1274 = vmul.u32 %v1269, %v1270
    %v1275 = vmul.u32 %v1269, %v1271
    %v1276 = vshll.u32 %v1273, 16
    %v1277 = vshrl.u32 %v1273, 16
    %v1278 = vshll.u32 %v1274, 16
    %v1279 = vshrl.u32 %v1274, 16
    %vm1280 = vc.u32 %v1272, %v1276
    %v1281 = vsel %vm1280, 1, 0
    %v1282 = vadd.s32 %v1272, %v1276
    %v1283 = vadd.s32 %v1275, %v1281
    %vm1284 = vc.u32 %v1282, %v1278
    %v1285 = vsel %vm1284, 1, 0
    %v1286 = vadd.s32 %v1282, %v1278
    %v1287 = vadd.s32 %v1283, %v1285
    %v1288 = vadd.s32 %v1287, %v1277
    %v1289 = vadd.s32 %v1288, %v1279
    %v1290 = vand.u32 %v1267, 65535
    %v1291 = vshrl.u32 %v1267, 16
    %v1292 = vand.u32 %v1262, 65535
    %v1293 = vshrl.u32 %v1262, 16
    %v1294 = vmul.u32 %v1290, %v1292
    %v1295 = vmul.u32 %v1290, %v1293
    %v1296 = vmul.u32 %v1291, %v1292
    %v1297 = vmul.u32 %v1291, %v1293
    %v1298 = vshll.u32 %v1295, 16
    %v1299 = vshrl.u32 %v1295, 16
    %v1300 = vshll.u32 %v1296, 16
    %v1301 = vshrl.u32 %v1296, 16
    %vm1302 = vc.u32 %v1294, %v1298
    %v1303 = vsel %vm1302, 1, 0
    %v1304 = vadd.s32 %v1294, %v1298
    %v1305 = vadd.s32 %v1297, %v1303
    %vm1306 = vc.u32 %v1304, %v1300
    %v1307 = vsel %vm1306, 1, 0
    %v1308 = vadd.s32 %v1304, %v1300
    %v1309 = vadd.s32 %v1305, %v1307
    %v1310 = vadd.s32 %v1309, %v1299
    %v1311 = vadd.s32 %v1310, %v1301
    %v1312 = vmul.u32 %v1267, %v1258
    %v1313 = vadd.s32 %v1289, %v1308
    %vm1314 = vc.u32 %v1289, %v1308
    %v1315 = vadd.s32 %v1311, 1
    %v1316 = vsel %vm1314, %v1315, %v1311
    %v1317 = vadd.s32 %v1312, %v1316
    %v1318 = vadd.s32 %v1317, 536870912
    %v1319 = vshrl.u32 %v1318, 30
    %v1320 = vshll.u32 %v1319, 30
    %v1321 = vsub.s32 %v1317, %v1320
    %vm1322 = vcmp.lt.s32.totalorder %v1321, 0
    %v1323 = vsub.s32 0, %v1321
    %v1324 = vsel %vm1322, %v1323, %v1321
    %v1325 = vclz %v1324
    %v1326 = vsub.s32 %v1325, 2
    %vm1327 = vcmp.gt.s32.totalorder 0, %v1326
    %v1328 = vsel %vm1327, 0, %v1326
    %v1329 = vsub.s32 32, %v1328
    %v1330 = vshll.u32 %v1321, %v1328
    %v1331 = vshrl.u32 %v1313, %v1329
    %v1332 = vor.u32 %v1330, %v1331
    %v1333 = vsub.s32 4294967266, %v1328
    %v1334 = vadd.s32 %v1333, 127
    %v1335 = vshll.u32 %v1334, 23
    %v1336 = vor.u32 4788187, %v1335
    %v1337 = vand.u32 2147483647, %v1336
    %v1339 = vcvt.s32.f32 %v1332
    %v1340 = vmul.f32 %v1339, %v1337
    %v1341 = vxor.u32 %v1340, 2147483648
    %v1342 = vsel %vm1221, %v1341, %v1340
    %v1343 = vsub.s32 4, %v1319
    %v1344 = vsel %vm1221, %v1343, %v1319
    %v1345 = vsel %vm1220, %v1218, %v1342
    %v1346 = vsel %vm1220, 0, %v1344
    %v1347 = vmul.f32 %v1345, %v1345
    %v1348 = vmul.f32 %v1347, -0.001358992
    %v1349 = vadd.f32 %v1348, 0.041655596
    %v1350 = vmul.f32 %v1347, %v1349
    %v1351 = vadd.f32 %v1350, -0.4999988
    %v1352 = vmul.f32 %v1347, %v1351
    %v1353 = vadd.f32 1.0, %v1352
    %v1354 = vmul.f32 %v1345, %v1345
    %v1355 = vmul.f32 %v1354, -0.00019511016
    %v1356 = vadd.f32 %v1355, 0.008332121
    %v1357 = vmul.f32 %v1354, %v1356
    %v1358 = vadd.f32 %v1357, -0.16666654
    %v1359 = vmul.f32 %v1354, %v1358
    %v1360 = vadd.f32 %v1359, 1.0
    %v1361 = vmul.f32 %v1360, %v1345
    %vm1362 = vweird.f32 %v1218
    %v1363 = vadd.s32 %v1346, 3
    %v1364 = vand.u32 %v1363, 3
    %vm1365 = vcmp.lt.s32.totalorder %v1364, 2
    %vm1366 = vcmp.eq.s32.totalorder %v1364, 0
    %v1367 = vxor.u32 %v1361, 2147483648
    %v1368 = vsel %vm1366, %v1353, %v1367
    %vm1369 = vcmp.eq.s32.totalorder %v1364, 2
    %v1370 = vxor.u32 %v1353, 2147483648
    %v1371 = vsel %vm1369, %v1370, %v1361
    %v1372 = vsel %vm1365, %v1368, %v1371
    %v1373 = vsel %vm1362, nan, %v1372
    %1374 = vst.msk [vmem:[#allocation2] sm:$0x1] %vm92, %v1373
    %v1375 = vld [vmem:[#allocation2] sm:$0x1]
    %v1376 = vld [vmem:[#allocation6 + $0x7] sm:$0x1]
    %v1377 = vld [vmem:[#allocation8 + $0x7] sm:$0x1]
    %v1378 = vld [vmem:[#allocation9 + $0x7] sm:$0x1]
    %v1379 = vld [vmem:[#allocation11 + $0x7] sm:$0x1]
    %v1380 = vmul.f32 %v1375, %v1376
    %1382 = vrot.lane.b32.xlu0 %v1377, 1
    %v1383 = vpop.permute.xlu0 %1382
    %v1385 = vmul.f32 %v1375, %v1383
    %1387 = vrot.lane.b32.xlu0 %v1385, 127
    %v1388 = vpop.permute.xlu0 %1387
    %v1390 = vadd.f32 %v1380, %v1388
    %1392 = vrot.lane.b32.xlu0 %v1378, 2
    %v1393 = vpop.permute.xlu0 %1392
    %v1395 = vmul.f32 %v1375, %v1393
    %1397 = vrot.lane.b32.xlu0 %v1395, 126
    %v1398 = vpop.permute.xlu0 %1397
    %v1400 = vadd.f32 %v1390, %v1398
    %v1401 = vadd.f32 %v1400, %v1379
    %v1402 = vand.u32 2147483647, %v1401
    %vm1403 = vcmp.le.f32.partialorder %v1402, 0.7853982
    %vm1404 = vcmp.lt.s32.totalorder %v1401, 0
    %v1405 = vand.u32 %v1401, 2139095040
    %v1406 = vshrl.u32 %v1405, 23
    %v1407 = vsub.s32 %v1406, 127
    %v1408 = vand.u32 2147483647, %v1401
    %v1409 = vand.u32 %v1408, 8388607
    %v1410 = vor.u32 %v1409, 8388608
    %v1411 = vsub.s32 0, %v1410
    %v1412 = vadd.s32 %v1407, 1
    %vm1413 = vcmp.gt.s32.totalorder %v1412, 0
    %v1414 = vsel %vm1413, %v1412, 0
    %v1415 = vshrl.u32 %v1414, 5
    %v1416 = vand.u32 %v1414, 31
    %v1417 = vsub.s32 32, %v1416
    %v1418 = vshrl.u32 683565275, %v1417
    %v1419 = vshll.u32 683565275, %v1416
    %v1420 = vshrl.u32 2475754826, %v1417
    %v1421 = vor.u32 %v1419, %v1420
    %v1422 = vshll.u32 2475754826, %v1416
    %v1423 = vshrl.u32 2131351028, %v1417
    %v1424 = vor.u32 %v1422, %v1423
    %v1425 = vshll.u32 2131351028, %v1416
    %v1426 = vshrl.u32 2102212464, %v1417
    %v1427 = vor.u32 %v1425, %v1426
    %v1428 = vshll.u32 2102212464, %v1416
    %v1429 = vshrl.u32 920167782, %v1417
    %v1430 = vor.u32 %v1428, %v1429
    %v1431 = vshll.u32 920167782, %v1416
    %v1432 = vshrl.u32 1326507024, %v1417
    %v1433 = vor.u32 %v1431, %v1432
    %vm1434 = vcmp.lt.s32.totalorder %v1415, 1
    %vm1435 = vcmp.lt.s32.totalorder %v1415, 2
    %vm1436 = vcmp.lt.s32.totalorder %v1415, 3
    %vm1437 = vcmp.lt.s32.totalorder %v1415, 4
    %v1438 = vsel %vm1434, %v1418, %v1421
    %v1439 = vsel %vm1437, %v1427, 2102212464
    %v1440 = vsel %vm1436, %v1424, %v1439
    %v1441 = vsel %vm1435, %v1438, %v1440
    %v1442 = vsel %vm1434, %v1421, %v1424
    %v1443 = vsel %vm1437, %v1430, 920167782
    %v1444 = vsel %vm1436, %v1427, %v1443
    %v1445 = vsel %vm1435, %v1442, %v1444
    %v1446 = vsel %vm1434, %v1424, %v1427
    %v1447 = vsel %vm1437, %v1433, 1326507024
    %v1448 = vsel %vm1436, %v1430, %v1447
    %v1449 = vsel %vm1435, %v1446, %v1448
    %v1450 = vshll.u32 %v1410, 8
    %v1451 = vand.u32 %v1450, 65535
    %v1452 = vshrl.u32 %v1450, 16
    %v1453 = vand.u32 %v1449, 65535
    %v1454 = vshrl.u32 %v1449, 16
    %v1455 = vmul.u32 %v1451, %v1453
    %v1456 = vmul.u32 %v1451, %v1454
    %v1457 = vmul.u32 %v1452, %v1453
    %v1458 = vmul.u32 %v1452, %v1454
    %v1459 = vshll.u32 %v1456, 16
    %v1460 = vshrl.u32 %v1456, 16
    %v1461 = vshll.u32 %v1457, 16
    %v1462 = vshrl.u32 %v1457, 16
    %vm1463 = vc.u32 %v1455, %v1459
    %v1464 = vsel %vm1463, 1, 0
    %v1465 = vadd.s32 %v1455, %v1459
    %v1466 = vadd.s32 %v1458, %v1464
    %vm1467 = vc.u32 %v1465, %v1461
    %v1468 = vsel %vm1467, 1, 0
    %v1469 = vadd.s32 %v1465, %v1461
    %v1470 = vadd.s32 %v1466, %v1468
    %v1471 = vadd.s32 %v1470, %v1460
    %v1472 = vadd.s32 %v1471, %v1462
    %v1473 = vand.u32 %v1450, 65535
    %v1474 = vshrl.u32 %v1450, 16
    %v1475 = vand.u32 %v1445, 65535
    %v1476 = vshrl.u32 %v1445, 16
    %v1477 = vmul.u32 %v1473, %v1475
    %v1478 = vmul.u32 %v1473, %v1476
    %v1479 = vmul.u32 %v1474, %v1475
    %v1480 = vmul.u32 %v1474, %v1476
    %v1481 = vshll.u32 %v1478, 16
    %v1482 = vshrl.u32 %v1478, 16
    %v1483 = vshll.u32 %v1479, 16
    %v1484 = vshrl.u32 %v1479, 16
    %vm1485 = vc.u32 %v1477, %v1481
    %v1486 = vsel %vm1485, 1, 0
    %v1487 = vadd.s32 %v1477, %v1481
    %v1488 = vadd.s32 %v1480, %v1486
    %vm1489 = vc.u32 %v1487, %v1483
    %v1490 = vsel %vm1489, 1, 0
    %v1491 = vadd.s32 %v1487, %v1483
    %v1492 = vadd.s32 %v1488, %v1490
    %v1493 = vadd.s32 %v1492, %v1482
    %v1494 = vadd.s32 %v1493, %v1484
    %v1495 = vmul.u32 %v1450, %v1441
    %v1496 = vadd.s32 %v1472, %v1491
    %vm1497 = vc.u32 %v1472, %v1491
    %v1498 = vadd.s32 %v1494, 1
    %v1499 = vsel %vm1497, %v1498, %v1494
    %v1500 = vadd.s32 %v1495, %v1499
    %v1501 = vadd.s32 %v1500, 536870912
    %v1502 = vshrl.u32 %v1501, 30
    %v1503 = vshll.u32 %v1502, 30
    %v1504 = vsub.s32 %v1500, %v1503
    %vm1505 = vcmp.lt.s32.totalorder %v1504, 0
    %v1506 = vsub.s32 0, %v1504
    %v1507 = vsel %vm1505, %v1506, %v1504
    %v1508 = vclz %v1507
    %v1509 = vsub.s32 %v1508, 2
    %vm1510 = vcmp.gt.s32.totalorder 0, %v1509
    %v1511 = vsel %vm1510, 0, %v1509
    %v1512 = vsub.s32 32, %v1511
    %v1513 = vshll.u32 %v1504, %v1511
    %v1514 = vshrl.u32 %v1496, %v1512
    %v1515 = vor.u32 %v1513, %v1514
    %v1516 = vsub.s32 4294967266, %v1511
    %v1517 = vadd.s32 %v1516, 127
    %v1518 = vshll.u32 %v1517, 23
    %v1519 = vor.u32 4788187, %v1518
    %v1520 = vand.u32 2147483647, %v1519
    %v1522 = vcvt.s32.f32 %v1515
    %v1523 = vmul.f32 %v1522, %v1520
    %v1524 = vxor.u32 %v1523, 2147483648
    %v1525 = vsel %vm1404, %v1524, %v1523
    %v1526 = vsub.s32 4, %v1502
    %v1527 = vsel %vm1404, %v1526, %v1502
    %v1528 = vsel %vm1403, %v1401, %v1525
    %v1529 = vsel %vm1403, 0, %v1527
    %v1530 = vmul.f32 %v1528, %v1528
    %v1531 = vmul.f32 %v1530, -0.001358992
    %v1532 = vadd.f32 %v1531, 0.041655596
    %v1533 = vmul.f32 %v1530, %v1532
    %v1534 = vadd.f32 %v1533, -0.4999988
    %v1535 = vmul.f32 %v1530, %v1534
    %v1536 = vadd.f32 1.0, %v1535
    %v1537 = vmul.f32 %v1528, %v1528
    %v1538 = vmul.f32 %v1537, -0.00019511016
    %v1539 = vadd.f32 %v1538, 0.008332121
    %v1540 = vmul.f32 %v1537, %v1539
    %v1541 = vadd.f32 %v1540, -0.16666654
    %v1542 = vmul.f32 %v1537, %v1541
    %v1543 = vadd.f32 %v1542, 1.0
    %v1544 = vmul.f32 %v1543, %v1528
    %vm1545 = vweird.f32 %v1401
    %v1546 = vadd.s32 %v1529, 3
    %v1547 = vand.u32 %v1546, 3
    %vm1548 = vcmp.lt.s32.totalorder %v1547, 2
    %vm1549 = vcmp.eq.s32.totalorder %v1547, 0
    %v1550 = vxor.u32 %v1544, 2147483648
    %v1551 = vsel %vm1549, %v1536, %v1550
    %vm1552 = vcmp.eq.s32.totalorder %v1547, 2
    %v1553 = vxor.u32 %v1536, 2147483648
    %v1554 = vsel %vm1552, %v1553, %v1544
    %v1555 = vsel %vm1548, %v1551, %v1554
    %v1556 = vsel %vm1545, nan, %v1555
    %1557 = vst.msk [vmem:[#allocation2] sm:$0x1] %vm92, %v1556
    %v1558 = vld [vmem:[#allocation2] sm:$0x1]
    %1559 = vst.msk [vmem:[#allocation12] sm:$0x1] %vm92, %v1558
    // Predicated region
    $region42: #{tpu_custom_call.1} parent=1 // pred_check
      _
    $region43: #{tpu_custom_call.1} parent=1 // pred_check_branch
      %1561 = sbr.rel (0) target = $region45
    $region44: #{tpu_custom_call.1} parent=1 // pred_region
      %1563 = vsyncadd [#allocation5], 0
      %s1565 = sshll.u32 [#allocation12], 4
      %s1566 = int_to_ptr.vmem [resolvable:$true] %s1565
      %s1567 = sshll.u32 %s5, 4
      %s1568 = int_to_ptr.hbm [resolvable:$true] %s1567
      %1570 = dma.vmem_to_hbm [thread:$0]  %s1566, 16, %s1568, [#allocation5]
    $region45: #{tpu_custom_call.1} parent=1 // pred_fallthru
      _
    // Predicated region
    $region46: #{tpu_custom_call.1} parent=1 // pred_check
      _
    $region47: #{tpu_custom_call.1} parent=1 // pred_check_branch
      %1572 = sbr.rel (0) target = $region49
    $region48: #{tpu_custom_call.1} parent=1 // pred_region
      %1574 = dma.done [#allocation5], 16
    $region49: #{tpu_custom_call.1} parent=1 // pred_fallthru
      _
    %1575 = vsyncpa [#allocation4], 1
    %1576 = vsyncpa [#allocation7], 1
    %1577 = vsyncpa [#allocation10], 1
    %1578 = vsyncpa [#allocation5], 1

</llo_original>
